<compile_context>
chip_gen: v7x
topology: tpu7x:2x2x1
jax: 0.10.0
libtpu: 0.0.40
codegen_flags: <defaults>
</compile_context>

<pallas_src>
import jax
import jax.numpy as jnp
from jax import lax
from jax.experimental import pallas as pl
from jax.experimental.pallas import tpu as pltpu

HIDDEN = 64
OUT_DIM = 2
OUT_PAD = 128    # lane-dense output width; wrapper slices [:, :OUT_DIM]
SUBLANES = 8     # f32 sublane group for batch padding


def descriminator_kernel(x_ref, wih_ref, whh_ref, b_ref, wout_ref, bout_ref,
                         out_ref, xg_ref):
    """Full forward pass of the discriminator in one kernel invocation.

    x_ref    : (T, Bp, nf)    float32  time-major, batch padded to mult. of 8
    wih_ref  : (nf, 4H)       float32  transposed weight_ih, gates (i,f,o,g),
                                       g columns pre-scaled by 2
    whh_ref  : (H, 4H)        float32  transposed weight_hh, same layout
    b_ref    : (1, 4H)        float32  bias_ih + bias_hh, same layout
    wout_ref : (H, OUT_PAD)   float32  transposed Linear weight, zero-padded
    bout_ref : (1, OUT_PAD)   float32
    out_ref  : (Bp, OUT_PAD)  float32
    xg_ref   : (T, Bp, 4H)    float32  VMEM scratch for hoisted projection
    """
    T, Bp, nf = x_ref.shape
    H = HIDDEN

    # ---- Hoisted input projection: one big MXU matmul for all timesteps,
    # with the combined bias folded in (no per-step broadcast/add). ----
    x_all = x_ref[...].reshape(T * Bp, nf)
    xg_ref[...] = (
        jnp.dot(x_all, wih_ref[...], preferred_element_type=jnp.float32)
        + b_ref[...]
    ).reshape(T, Bp, 4 * H)

    h0 = jnp.zeros((Bp, H), jnp.float32)
    c0 = jnp.zeros((Bp, H), jnp.float32)

    def step(t, carry):
        h, c = carry
        # Read whh from VMEM inside the step so its 16-vreg footprint is not
        # pinned live across all unrolled iterations (vreg-pressure relief).
        gates = xg_ref[t] + jnp.dot(
            h, whh_ref[...], preferred_element_type=jnp.float32)
        # One unmasked full-width (Bp, 4H) sigmoid pass.  The g-gate
        # pre-activations were scaled by 2 in the weights, so
        # tanh(x_g) == 2*sigmoid(2*x_g) - 1 is a single fma afterwards.
        sig = jax.nn.sigmoid(gates)
        i_g = sig[:, 0 * H:1 * H]
        f_g = sig[:, 1 * H:2 * H]
        o_g = sig[:, 2 * H:3 * H]
        g_g = 2.0 * sig[:, 3 * H:4 * H] - 1.0
        # TODO(synk): optional lane-packing of the 64-wide cell update into
        # full 128-lane vregs via pltpu.roll to halve VPU ops on the chain.
        c_new = f_g * c + i_g * g_g
        h_new = o_g * jnp.tanh(c_new)
        return (h_new, c_new)

    # T is static and small -> fully unroll for cross-iteration scheduling.
    h_last, _ = lax.fori_loop(0, T, step, (h0, c0), unroll=True)

    logits = (
        jnp.dot(h_last, wout_ref[...], preferred_element_type=jnp.float32)
        + bout_ref[...]
    )
    out_ref[...] = jax.nn.sigmoid(logits).astype(out_ref.dtype)


def descriminator_forward(x, kernel_params):
    """x: (B, T, nf) float32, batch_first like the PyTorch module."""
    wih, whh, b, wout, bout = kernel_params
    B, T, nf = x.shape
    Bp = ((B + SUBLANES - 1) // SUBLANES) * SUBLANES  # pad batch to sublane group

    x_p = jnp.pad(x, ((0, Bp - B), (0, 0), (0, 0)))
    x_tbf = jnp.transpose(x_p, (1, 0, 2))             # (T, Bp, nf), time-major

    vmem = pl.BlockSpec(memory_space=pltpu.MemorySpace.VMEM)
    out_pad = pl.pallas_call(
        descriminator_kernel,
        out_shape=jax.ShapeDtypeStruct((Bp, OUT_PAD), jnp.float32),
        in_specs=[vmem] * 6,
        out_specs=vmem,
        scratch_shapes=[pltpu.VMEM((T, Bp, 4 * HIDDEN), jnp.float32)],
    )(x_tbf, wih, whh, b, wout, bout)

    return out_pad[:B, :OUT_DIM]


def init_params(key, nf):
    """Raw PyTorch-style params: shapes/order exactly like torch.nn.LSTM +
    nn.Linear, gate block order (i, f, g, o), uniform(-1/sqrt(H), 1/sqrt(H))."""
    H = HIDDEN
    k = 1.0 / jnp.sqrt(H)
    ks = jax.random.split(key, 6)
    w_ih = jax.random.uniform(ks[0], (4 * H, nf), jnp.float32, -k, k)
    w_hh = jax.random.uniform(ks[1], (4 * H, H), jnp.float32, -k, k)
    b_ih = jax.random.uniform(ks[2], (4 * H,), jnp.float32, -k, k)
    b_hh = jax.random.uniform(ks[3], (4 * H,), jnp.float32, -k, k)
    w_out = jax.random.uniform(ks[4], (OUT_DIM, H), jnp.float32, -k, k)
    b_out = jax.random.uniform(ks[5], (OUT_DIM,), jnp.float32, -k, k)
    return (w_ih, w_hh, b_ih, b_hh, w_out, b_out)


def prepare_kernel_params(raw_params):
    """PyTorch layout -> kernel layout:
      * transpose, gate blocks reordered (i,f,g,o) -> (i,f,o,g)
      * g-gate rows/entries scaled by 2 (so one sigmoid pass covers tanh)
      * biases combined, Linear padded to a lane-dense 128-wide output."""
    w_ih, w_hh, b_ih, b_hh, w_out, b_out = raw_params
    H = HIDDEN

    def _gate_layout(w):
        i, f, g, o = jnp.split(w, 4, axis=0)
        return jnp.concatenate([i, f, o, 2.0 * g], axis=0)

    wih = _gate_layout(w_ih).T                           # (nf, 4H)
    whh = _gate_layout(w_hh).T                           # (H, 4H)
    b = _gate_layout(b_ih + b_hh)[None, :]               # (1, 4H)
    wout = jnp.zeros((H, OUT_PAD), jnp.float32).at[:, :OUT_DIM].set(w_out.T)
    bout = jnp.zeros((1, OUT_PAD), jnp.float32).at[0, :OUT_DIM].set(b_out)
    return (wih, whh, b, wout, bout)


def reference_forward(x, raw_params):
    """Pure-JAX reference with true PyTorch LSTM + Linear + Sigmoid semantics
    on the RAW PyTorch-shaped params (gate order i, f, g, o) — independently
    validates the kernel-layout transform in prepare_kernel_params."""
    w_ih, w_hh, b_ih, b_hh, w_out, b_out = raw_params
    B, T, _ = x.shape
    H = HIDDEN
    h = jnp.zeros((B, H), jnp.float32)
    c = jnp.zeros((B, H), jnp.float32)
    for t in range(T):
        gates = x[:, t, :] @ w_ih.T + h @ w_hh.T + b_ih + b_hh
        i_g = jax.nn.sigmoid(gates[:, 0 * H:1 * H])
        f_g = jax.nn.sigmoid(gates[:, 1 * H:2 * H])
        g_g = jnp.tanh(gates[:, 2 * H:3 * H])
        o_g = jax.nn.sigmoid(gates[:, 3 * H:4 * H])
        c = f_g * c + i_g * g_g
        h = o_g * jnp.tanh(c)
    return jax.nn.sigmoid(h @ w_out.T + b_out)


if __name__ == "__main__":
    B, T, NF = 2, 8, 32  # batch=2, seq=8, feature dim nf=32

    key = jax.random.PRNGKey(0)
    k_x, k_p = jax.random.split(key)
    x = jax.random.normal(k_x, (B, T, NF), jnp.float32)

    raw_params = init_params(k_p, NF)
    kernel_params = prepare_kernel_params(raw_params)

    out = descriminator_forward(x, kernel_params)
    out = jax.block_until_ready(out)

    ref = reference_forward(x, raw_params)
    assert out.shape == (B, OUT_DIM)
    assert jnp.allclose(out, ref, rtol=1e-5, atol=1e-5), (out, ref)

    print("KERNEL_OK")
</pallas_src>

<mosaic_0001>
module attributes {stable_mosaic.version = 11 : i64} {
  func.func @descriminator_kernel(%arg0: memref<8x8x32xf32, #tpu.memory_space<vmem>>, %arg1: memref<32x256xf32, #tpu.memory_space<vmem>>, %arg2: memref<64x256xf32, #tpu.memory_space<vmem>>, %arg3: memref<1x256xf32, #tpu.memory_space<vmem>>, %arg4: memref<64x128xf32, #tpu.memory_space<vmem>>, %arg5: memref<1x128xf32, #tpu.memory_space<vmem>>, %arg6: memref<8x128xf32, #tpu.memory_space<vmem>>, %arg7: memref<8x8x256xf32, #tpu.memory_space<vmem>>) attributes {dimension_semantics = [], scalar_prefetch = 0 : i64, scratch_operands = 1 : i64, tpu.core_type = #tpu.core_type<tc>} {
    %c0 = arith.constant 0 : index
    %c0_0 = arith.constant 0 : index
    %c0_1 = arith.constant 0 : index
    %0 = vector.load %arg0[%c0, %c0_0, %c0_1] : memref<8x8x32xf32, #tpu.memory_space<vmem>>, vector<8x8x32xf32>
    %1 = vector.shape_cast %0 : vector<8x8x32xf32> to vector<64x32xf32>
    %c0_2 = arith.constant 0 : index
    %c0_3 = arith.constant 0 : index
    %2 = vector.load %arg1[%c0_2, %c0_3] : memref<32x256xf32, #tpu.memory_space<vmem>>, vector<32x256xf32>
    %cst = arith.constant dense<0.000000e+00> : vector<64x256xf32>
    %3 = tpu.matmul %1, %2, %cst {dimension_numbers = #tpu.dot_dimension_numbers<[1], [0], [0], [1], [0, 0, 1, 1], [], []>} : vector<64x32xf32>, vector<32x256xf32>, vector<64x256xf32> -> vector<64x256xf32>
    %c0_4 = arith.constant 0 : index
    %c0_5 = arith.constant 0 : index
    %4 = vector.load %arg3[%c0_4, %c0_5] : memref<1x256xf32, #tpu.memory_space<vmem>>, vector<1x256xf32>
    %5 = vector.broadcast %4 : vector<1x256xf32> to vector<64x256xf32>
    %6 = arith.addf %3, %5 : vector<64x256xf32>
    %7 = vector.shape_cast %6 : vector<64x256xf32> to vector<8x8x256xf32>
    %c0_6 = arith.constant 0 : index
    %c0_7 = arith.constant 0 : index
    %c0_8 = arith.constant 0 : index
    %8 = vector.load %arg7[%c0_6, %c0_7, %c0_8] : memref<8x8x256xf32, #tpu.memory_space<vmem>>, vector<8x8x256xf32>
    tpu.vector_store %arg7[%c0_6, %c0_7, %c0_8], %7 {strides = array<i32>} : memref<8x8x256xf32, #tpu.memory_space<vmem>>, vector<8x8x256xf32>,
    %cst_9 = arith.constant 0.000000e+00 : f32
    %9 = vector.broadcast %cst_9 : f32 to vector<8x64xf32>
    %cst_10 = arith.constant 0.000000e+00 : f32
    %10 = vector.broadcast %cst_10 : f32 to vector<8x64xf32>
    %c0_i32 = arith.constant 0 : i32
    %11 = arith.index_cast %c0_i32 : i32 to index
    %c0_11 = arith.constant 0 : index
    %c0_12 = arith.constant 0 : index
    %12 = vector.load %arg7[%11, %c0_11, %c0_12] : memref<8x8x256xf32, #tpu.memory_space<vmem>>, vector<1x8x256xf32>
    %13 = vector.shape_cast %12 : vector<1x8x256xf32> to vector<8x256xf32>
    %c0_13 = arith.constant 0 : index
    %c0_14 = arith.constant 0 : index
    %14 = vector.load %arg2[%c0_13, %c0_14] : memref<64x256xf32, #tpu.memory_space<vmem>>, vector<64x256xf32>
    %cst_15 = arith.constant dense<0.000000e+00> : vector<8x256xf32>
    %15 = tpu.matmul %9, %14, %cst_15 {dimension_numbers = #tpu.dot_dimension_numbers<[1], [0], [0], [1], [0, 0, 1, 1], [], []>} : vector<8x64xf32>, vector<64x256xf32>, vector<8x256xf32> -> vector<8x256xf32>
    %16 = arith.addf %13, %15 : vector<8x256xf32>
    %17 = arith.negf %16 : vector<8x256xf32>
    %18 = math.exp %17 : vector<8x256xf32>
    %cst_16 = arith.constant 1.000000e+00 : f32
    %19 = vector.broadcast %cst_16 : f32 to vector<8x256xf32>
    %20 = arith.addf %19, %18 : vector<8x256xf32>
    %21 = arith.divf %19, %20 : vector<8x256xf32>
    %22 = vector.extract_strided_slice %21 {offsets = [0, 0], sizes = [8, 64], strides = [1, 1]} : vector<8x256xf32> to vector<8x64xf32>
    %23 = vector.extract_strided_slice %21 {offsets = [0, 64], sizes = [8, 64], strides = [1, 1]} : vector<8x256xf32> to vector<8x64xf32>
    %24 = vector.extract_strided_slice %21 {offsets = [0, 128], sizes = [8, 64], strides = [1, 1]} : vector<8x256xf32> to vector<8x64xf32>
    %25 = vector.extract_strided_slice %21 {offsets = [0, 192], sizes = [8, 64], strides = [1, 1]} : vector<8x256xf32> to vector<8x64xf32>
    %cst_17 = arith.constant 2.000000e+00 : f32
    %26 = vector.broadcast %cst_17 : f32 to vector<8x64xf32>
    %27 = arith.mulf %26, %25 : vector<8x64xf32>
    %cst_18 = arith.constant 1.000000e+00 : f32
    %28 = vector.broadcast %cst_18 : f32 to vector<8x64xf32>
    %29 = arith.subf %27, %28 : vector<8x64xf32>
    %30 = arith.mulf %23, %10 : vector<8x64xf32>
    %31 = arith.mulf %22, %29 : vector<8x64xf32>
    %32 = arith.addf %30, %31 : vector<8x64xf32>
    %33 = math.tanh %32 : vector<8x64xf32>
    %34 = arith.mulf %24, %33 : vector<8x64xf32>
    %c1_i32 = arith.constant 1 : i32
    %35 = arith.index_cast %c1_i32 : i32 to index
    %c0_19 = arith.constant 0 : index
    %c0_20 = arith.constant 0 : index
    %36 = vector.load %arg7[%35, %c0_19, %c0_20] : memref<8x8x256xf32, #tpu.memory_space<vmem>>, vector<1x8x256xf32>
    %37 = vector.shape_cast %36 : vector<1x8x256xf32> to vector<8x256xf32>
    %c0_21 = arith.constant 0 : index
    %c0_22 = arith.constant 0 : index
    %38 = vector.load %arg2[%c0_21, %c0_22] : memref<64x256xf32, #tpu.memory_space<vmem>>, vector<64x256xf32>
    %cst_23 = arith.constant dense<0.000000e+00> : vector<8x256xf32>
    %39 = tpu.matmul %34, %38, %cst_23 {dimension_numbers = #tpu.dot_dimension_numbers<[1], [0], [0], [1], [0, 0, 1, 1], [], []>} : vector<8x64xf32>, vector<64x256xf32>, vector<8x256xf32> -> vector<8x256xf32>
    %40 = arith.addf %37, %39 : vector<8x256xf32>
    %41 = arith.negf %40 : vector<8x256xf32>
    %42 = math.exp %41 : vector<8x256xf32>
    %cst_24 = arith.constant 1.000000e+00 : f32
    %43 = vector.broadcast %cst_24 : f32 to vector<8x256xf32>
    %44 = arith.addf %43, %42 : vector<8x256xf32>
    %45 = arith.divf %43, %44 : vector<8x256xf32>
    %46 = vector.extract_strided_slice %45 {offsets = [0, 0], sizes = [8, 64], strides = [1, 1]} : vector<8x256xf32> to vector<8x64xf32>
    %47 = vector.extract_strided_slice %45 {offsets = [0, 64], sizes = [8, 64], strides = [1, 1]} : vector<8x256xf32> to vector<8x64xf32>
    %48 = vector.extract_strided_slice %45 {offsets = [0, 128], sizes = [8, 64], strides = [1, 1]} : vector<8x256xf32> to vector<8x64xf32>
    %49 = vector.extract_strided_slice %45 {offsets = [0, 192], sizes = [8, 64], strides = [1, 1]} : vector<8x256xf32> to vector<8x64xf32>
    %cst_25 = arith.constant 2.000000e+00 : f32
    %50 = vector.broadcast %cst_25 : f32 to vector<8x64xf32>
    %51 = arith.mulf %50, %49 : vector<8x64xf32>
    %cst_26 = arith.constant 1.000000e+00 : f32
    %52 = vector.broadcast %cst_26 : f32 to vector<8x64xf32>
    %53 = arith.subf %51, %52 : vector<8x64xf32>
    %54 = arith.mulf %47, %32 : vector<8x64xf32>
    %55 = arith.mulf %46, %53 : vector<8x64xf32>
    %56 = arith.addf %54, %55 : vector<8x64xf32>
    %57 = math.tanh %56 : vector<8x64xf32>
    %58 = arith.mulf %48, %57 : vector<8x64xf32>
    %c2_i32 = arith.constant 2 : i32
    %59 = arith.index_cast %c2_i32 : i32 to index
    %c0_27 = arith.constant 0 : index
    %c0_28 = arith.constant 0 : index
    %60 = vector.load %arg7[%59, %c0_27, %c0_28] : memref<8x8x256xf32, #tpu.memory_space<vmem>>, vector<1x8x256xf32>
    %61 = vector.shape_cast %60 : vector<1x8x256xf32> to vector<8x256xf32>
    %c0_29 = arith.constant 0 : index
    %c0_30 = arith.constant 0 : index
    %62 = vector.load %arg2[%c0_29, %c0_30] : memref<64x256xf32, #tpu.memory_space<vmem>>, vector<64x256xf32>
    %cst_31 = arith.constant dense<0.000000e+00> : vector<8x256xf32>
    %63 = tpu.matmul %58, %62, %cst_31 {dimension_numbers = #tpu.dot_dimension_numbers<[1], [0], [0], [1], [0, 0, 1, 1], [], []>} : vector<8x64xf32>, vector<64x256xf32>, vector<8x256xf32> -> vector<8x256xf32>
    %64 = arith.addf %61, %63 : vector<8x256xf32>
    %65 = arith.negf %64 : vector<8x256xf32>
    %66 = math.exp %65 : vector<8x256xf32>
    %cst_32 = arith.constant 1.000000e+00 : f32
    %67 = vector.broadcast %cst_32 : f32 to vector<8x256xf32>
    %68 = arith.addf %67, %66 : vector<8x256xf32>
    %69 = arith.divf %67, %68 : vector<8x256xf32>
    %70 = vector.extract_strided_slice %69 {offsets = [0, 0], sizes = [8, 64], strides = [1, 1]} : vector<8x256xf32> to vector<8x64xf32>
    %71 = vector.extract_strided_slice %69 {offsets = [0, 64], sizes = [8, 64], strides = [1, 1]} : vector<8x256xf32> to vector<8x64xf32>
    %72 = vector.extract_strided_slice %69 {offsets = [0, 128], sizes = [8, 64], strides = [1, 1]} : vector<8x256xf32> to vector<8x64xf32>
    %73 = vector.extract_strided_slice %69 {offsets = [0, 192], sizes = [8, 64], strides = [1, 1]} : vector<8x256xf32> to vector<8x64xf32>
    %cst_33 = arith.constant 2.000000e+00 : f32
    %74 = vector.broadcast %cst_33 : f32 to vector<8x64xf32>
    %75 = arith.mulf %74, %73 : vector<8x64xf32>
    %cst_34 = arith.constant 1.000000e+00 : f32
    %76 = vector.broadcast %cst_34 : f32 to vector<8x64xf32>
    %77 = arith.subf %75, %76 : vector<8x64xf32>
    %78 = arith.mulf %71, %56 : vector<8x64xf32>
    %79 = arith.mulf %70, %77 : vector<8x64xf32>
    %80 = arith.addf %78, %79 : vector<8x64xf32>
    %81 = math.tanh %80 : vector<8x64xf32>
    %82 = arith.mulf %72, %81 : vector<8x64xf32>
    %c3_i32 = arith.constant 3 : i32
    %83 = arith.index_cast %c3_i32 : i32 to index
    %c0_35 = arith.constant 0 : index
    %c0_36 = arith.constant 0 : index
    %84 = vector.load %arg7[%83, %c0_35, %c0_36] : memref<8x8x256xf32, #tpu.memory_space<vmem>>, vector<1x8x256xf32>
    %85 = vector.shape_cast %84 : vector<1x8x256xf32> to vector<8x256xf32>
    %c0_37 = arith.constant 0 : index
    %c0_38 = arith.constant 0 : index
    %86 = vector.load %arg2[%c0_37, %c0_38] : memref<64x256xf32, #tpu.memory_space<vmem>>, vector<64x256xf32>
    %cst_39 = arith.constant dense<0.000000e+00> : vector<8x256xf32>
    %87 = tpu.matmul %82, %86, %cst_39 {dimension_numbers = #tpu.dot_dimension_numbers<[1], [0], [0], [1], [0, 0, 1, 1], [], []>} : vector<8x64xf32>, vector<64x256xf32>, vector<8x256xf32> -> vector<8x256xf32>
    %88 = arith.addf %85, %87 : vector<8x256xf32>
    %89 = arith.negf %88 : vector<8x256xf32>
    %90 = math.exp %89 : vector<8x256xf32>
    %cst_40 = arith.constant 1.000000e+00 : f32
    %91 = vector.broadcast %cst_40 : f32 to vector<8x256xf32>
    %92 = arith.addf %91, %90 : vector<8x256xf32>
    %93 = arith.divf %91, %92 : vector<8x256xf32>
    %94 = vector.extract_strided_slice %93 {offsets = [0, 0], sizes = [8, 64], strides = [1, 1]} : vector<8x256xf32> to vector<8x64xf32>
    %95 = vector.extract_strided_slice %93 {offsets = [0, 64], sizes = [8, 64], strides = [1, 1]} : vector<8x256xf32> to vector<8x64xf32>
    %96 = vector.extract_strided_slice %93 {offsets = [0, 128], sizes = [8, 64], strides = [1, 1]} : vector<8x256xf32> to vector<8x64xf32>
    %97 = vector.extract_strided_slice %93 {offsets = [0, 192], sizes = [8, 64], strides = [1, 1]} : vector<8x256xf32> to vector<8x64xf32>
    %cst_41 = arith.constant 2.000000e+00 : f32
    %98 = vector.broadcast %cst_41 : f32 to vector<8x64xf32>
    %99 = arith.mulf %98, %97 : vector<8x64xf32>
    %cst_42 = arith.constant 1.000000e+00 : f32
    %100 = vector.broadcast %cst_42 : f32 to vector<8x64xf32>
    %101 = arith.subf %99, %100 : vector<8x64xf32>
    %102 = arith.mulf %95, %80 : vector<8x64xf32>
    %103 = arith.mulf %94, %101 : vector<8x64xf32>
    %104 = arith.addf %102, %103 : vector<8x64xf32>
    %105 = math.tanh %104 : vector<8x64xf32>
    %106 = arith.mulf %96, %105 : vector<8x64xf32>
    %c4_i32 = arith.constant 4 : i32
    %107 = arith.index_cast %c4_i32 : i32 to index
    %c0_43 = arith.constant 0 : index
    %c0_44 = arith.constant 0 : index
    %108 = vector.load %arg7[%107, %c0_43, %c0_44] : memref<8x8x256xf32, #tpu.memory_space<vmem>>, vector<1x8x256xf32>
    %109 = vector.shape_cast %108 : vector<1x8x256xf32> to vector<8x256xf32>
    %c0_45 = arith.constant 0 : index
    %c0_46 = arith.constant 0 : index
    %110 = vector.load %arg2[%c0_45, %c0_46] : memref<64x256xf32, #tpu.memory_space<vmem>>, vector<64x256xf32>
    %cst_47 = arith.constant dense<0.000000e+00> : vector<8x256xf32>
    %111 = tpu.matmul %106, %110, %cst_47 {dimension_numbers = #tpu.dot_dimension_numbers<[1], [0], [0], [1], [0, 0, 1, 1], [], []>} : vector<8x64xf32>, vector<64x256xf32>, vector<8x256xf32> -> vector<8x256xf32>
    %112 = arith.addf %109, %111 : vector<8x256xf32>
    %113 = arith.negf %112 : vector<8x256xf32>
    %114 = math.exp %113 : vector<8x256xf32>
    %cst_48 = arith.constant 1.000000e+00 : f32
    %115 = vector.broadcast %cst_48 : f32 to vector<8x256xf32>
    %116 = arith.addf %115, %114 : vector<8x256xf32>
    %117 = arith.divf %115, %116 : vector<8x256xf32>
    %118 = vector.extract_strided_slice %117 {offsets = [0, 0], sizes = [8, 64], strides = [1, 1]} : vector<8x256xf32> to vector<8x64xf32>
    %119 = vector.extract_strided_slice %117 {offsets = [0, 64], sizes = [8, 64], strides = [1, 1]} : vector<8x256xf32> to vector<8x64xf32>
    %120 = vector.extract_strided_slice %117 {offsets = [0, 128], sizes = [8, 64], strides = [1, 1]} : vector<8x256xf32> to vector<8x64xf32>
    %121 = vector.extract_strided_slice %117 {offsets = [0, 192], sizes = [8, 64], strides = [1, 1]} : vector<8x256xf32> to vector<8x64xf32>
    %cst_49 = arith.constant 2.000000e+00 : f32
    %122 = vector.broadcast %cst_49 : f32 to vector<8x64xf32>
    %123 = arith.mulf %122, %121 : vector<8x64xf32>
    %cst_50 = arith.constant 1.000000e+00 : f32
    %124 = vector.broadcast %cst_50 : f32 to vector<8x64xf32>
    %125 = arith.subf %123, %124 : vector<8x64xf32>
    %126 = arith.mulf %119, %104 : vector<8x64xf32>
    %127 = arith.mulf %118, %125 : vector<8x64xf32>
    %128 = arith.addf %126, %127 : vector<8x64xf32>
    %129 = math.tanh %128 : vector<8x64xf32>
    %130 = arith.mulf %120, %129 : vector<8x64xf32>
    %c5_i32 = arith.constant 5 : i32
    %131 = arith.index_cast %c5_i32 : i32 to index
    %c0_51 = arith.constant 0 : index
    %c0_52 = arith.constant 0 : index
    %132 = vector.load %arg7[%131, %c0_51, %c0_52] : memref<8x8x256xf32, #tpu.memory_space<vmem>>, vector<1x8x256xf32>
    %133 = vector.shape_cast %132 : vector<1x8x256xf32> to vector<8x256xf32>
    %c0_53 = arith.constant 0 : index
    %c0_54 = arith.constant 0 : index
    %134 = vector.load %arg2[%c0_53, %c0_54] : memref<64x256xf32, #tpu.memory_space<vmem>>, vector<64x256xf32>
    %cst_55 = arith.constant dense<0.000000e+00> : vector<8x256xf32>
    %135 = tpu.matmul %130, %134, %cst_55 {dimension_numbers = #tpu.dot_dimension_numbers<[1], [0], [0], [1], [0, 0, 1, 1], [], []>} : vector<8x64xf32>, vector<64x256xf32>, vector<8x256xf32> -> vector<8x256xf32>
    %136 = arith.addf %133, %135 : vector<8x256xf32>
    %137 = arith.negf %136 : vector<8x256xf32>
    %138 = math.exp %137 : vector<8x256xf32>
    %cst_56 = arith.constant 1.000000e+00 : f32
    %139 = vector.broadcast %cst_56 : f32 to vector<8x256xf32>
    %140 = arith.addf %139, %138 : vector<8x256xf32>
    %141 = arith.divf %139, %140 : vector<8x256xf32>
    %142 = vector.extract_strided_slice %141 {offsets = [0, 0], sizes = [8, 64], strides = [1, 1]} : vector<8x256xf32> to vector<8x64xf32>
    %143 = vector.extract_strided_slice %141 {offsets = [0, 64], sizes = [8, 64], strides = [1, 1]} : vector<8x256xf32> to vector<8x64xf32>
    %144 = vector.extract_strided_slice %141 {offsets = [0, 128], sizes = [8, 64], strides = [1, 1]} : vector<8x256xf32> to vector<8x64xf32>
    %145 = vector.extract_strided_slice %141 {offsets = [0, 192], sizes = [8, 64], strides = [1, 1]} : vector<8x256xf32> to vector<8x64xf32>
    %cst_57 = arith.constant 2.000000e+00 : f32
    %146 = vector.broadcast %cst_57 : f32 to vector<8x64xf32>
    %147 = arith.mulf %146, %145 : vector<8x64xf32>
    %cst_58 = arith.constant 1.000000e+00 : f32
    %148 = vector.broadcast %cst_58 : f32 to vector<8x64xf32>
    %149 = arith.subf %147, %148 : vector<8x64xf32>
    %150 = arith.mulf %143, %128 : vector<8x64xf32>
    %151 = arith.mulf %142, %149 : vector<8x64xf32>
    %152 = arith.addf %150, %151 : vector<8x64xf32>
    %153 = math.tanh %152 : vector<8x64xf32>
    %154 = arith.mulf %144, %153 : vector<8x64xf32>
    %c6_i32 = arith.constant 6 : i32
    %155 = arith.index_cast %c6_i32 : i32 to index
    %c0_59 = arith.constant 0 : index
    %c0_60 = arith.constant 0 : index
    %156 = vector.load %arg7[%155, %c0_59, %c0_60] : memref<8x8x256xf32, #tpu.memory_space<vmem>>, vector<1x8x256xf32>
    %157 = vector.shape_cast %156 : vector<1x8x256xf32> to vector<8x256xf32>
    %c0_61 = arith.constant 0 : index
    %c0_62 = arith.constant 0 : index
    %158 = vector.load %arg2[%c0_61, %c0_62] : memref<64x256xf32, #tpu.memory_space<vmem>>, vector<64x256xf32>
    %cst_63 = arith.constant dense<0.000000e+00> : vector<8x256xf32>
    %159 = tpu.matmul %154, %158, %cst_63 {dimension_numbers = #tpu.dot_dimension_numbers<[1], [0], [0], [1], [0, 0, 1, 1], [], []>} : vector<8x64xf32>, vector<64x256xf32>, vector<8x256xf32> -> vector<8x256xf32>
    %160 = arith.addf %157, %159 : vector<8x256xf32>
    %161 = arith.negf %160 : vector<8x256xf32>
    %162 = math.exp %161 : vector<8x256xf32>
    %cst_64 = arith.constant 1.000000e+00 : f32
    %163 = vector.broadcast %cst_64 : f32 to vector<8x256xf32>
    %164 = arith.addf %163, %162 : vector<8x256xf32>
    %165 = arith.divf %163, %164 : vector<8x256xf32>
    %166 = vector.extract_strided_slice %165 {offsets = [0, 0], sizes = [8, 64], strides = [1, 1]} : vector<8x256xf32> to vector<8x64xf32>
    %167 = vector.extract_strided_slice %165 {offsets = [0, 64], sizes = [8, 64], strides = [1, 1]} : vector<8x256xf32> to vector<8x64xf32>
    %168 = vector.extract_strided_slice %165 {offsets = [0, 128], sizes = [8, 64], strides = [1, 1]} : vector<8x256xf32> to vector<8x64xf32>
    %169 = vector.extract_strided_slice %165 {offsets = [0, 192], sizes = [8, 64], strides = [1, 1]} : vector<8x256xf32> to vector<8x64xf32>
    %cst_65 = arith.constant 2.000000e+00 : f32
    %170 = vector.broadcast %cst_65 : f32 to vector<8x64xf32>
    %171 = arith.mulf %170, %169 : vector<8x64xf32>
    %cst_66 = arith.constant 1.000000e+00 : f32
    %172 = vector.broadcast %cst_66 : f32 to vector<8x64xf32>
    %173 = arith.subf %171, %172 : vector<8x64xf32>
    %174 = arith.mulf %167, %152 : vector<8x64xf32>
    %175 = arith.mulf %166, %173 : vector<8x64xf32>
    %176 = arith.addf %174, %175 : vector<8x64xf32>
    %177 = math.tanh %176 : vector<8x64xf32>
    %178 = arith.mulf %168, %177 : vector<8x64xf32>
    %c7_i32 = arith.constant 7 : i32
    %179 = arith.index_cast %c7_i32 : i32 to index
    %c0_67 = arith.constant 0 : index
    %c0_68 = arith.constant 0 : index
    %180 = vector.load %arg7[%179, %c0_67, %c0_68] : memref<8x8x256xf32, #tpu.memory_space<vmem>>, vector<1x8x256xf32>
    %181 = vector.shape_cast %180 : vector<1x8x256xf32> to vector<8x256xf32>
    %c0_69 = arith.constant 0 : index
    %c0_70 = arith.constant 0 : index
    %182 = vector.load %arg2[%c0_69, %c0_70] : memref<64x256xf32, #tpu.memory_space<vmem>>, vector<64x256xf32>
    %cst_71 = arith.constant dense<0.000000e+00> : vector<8x256xf32>
    %183 = tpu.matmul %178, %182, %cst_71 {dimension_numbers = #tpu.dot_dimension_numbers<[1], [0], [0], [1], [0, 0, 1, 1], [], []>} : vector<8x64xf32>, vector<64x256xf32>, vector<8x256xf32> -> vector<8x256xf32>
    %184 = arith.addf %181, %183 : vector<8x256xf32>
    %185 = arith.negf %184 : vector<8x256xf32>
    %186 = math.exp %185 : vector<8x256xf32>
    %cst_72 = arith.constant 1.000000e+00 : f32
    %187 = vector.broadcast %cst_72 : f32 to vector<8x256xf32>
    %188 = arith.addf %187, %186 : vector<8x256xf32>
    %189 = arith.divf %187, %188 : vector<8x256xf32>
    %190 = vector.extract_strided_slice %189 {offsets = [0, 0], sizes = [8, 64], strides = [1, 1]} : vector<8x256xf32> to vector<8x64xf32>
    %191 = vector.extract_strided_slice %189 {offsets = [0, 64], sizes = [8, 64], strides = [1, 1]} : vector<8x256xf32> to vector<8x64xf32>
    %192 = vector.extract_strided_slice %189 {offsets = [0, 128], sizes = [8, 64], strides = [1, 1]} : vector<8x256xf32> to vector<8x64xf32>
    %193 = vector.extract_strided_slice %189 {offsets = [0, 192], sizes = [8, 64], strides = [1, 1]} : vector<8x256xf32> to vector<8x64xf32>
    %cst_73 = arith.constant 2.000000e+00 : f32
    %194 = vector.broadcast %cst_73 : f32 to vector<8x64xf32>
    %195 = arith.mulf %194, %193 : vector<8x64xf32>
    %cst_74 = arith.constant 1.000000e+00 : f32
    %196 = vector.broadcast %cst_74 : f32 to vector<8x64xf32>
    %197 = arith.subf %195, %196 : vector<8x64xf32>
    %198 = arith.mulf %191, %176 : vector<8x64xf32>
    %199 = arith.mulf %190, %197 : vector<8x64xf32>
    %200 = arith.addf %198, %199 : vector<8x64xf32>
    %201 = math.tanh %200 : vector<8x64xf32>
    %202 = arith.mulf %192, %201 : vector<8x64xf32>
    %c8_i32 = arith.constant 8 : i32
    %c0_75 = arith.constant 0 : index
    %c0_76 = arith.constant 0 : index
    %203 = vector.load %arg4[%c0_75, %c0_76] : memref<64x128xf32, #tpu.memory_space<vmem>>, vector<64x128xf32>
    %cst_77 = arith.constant dense<0.000000e+00> : vector<8x128xf32>
    %204 = tpu.matmul %202, %203, %cst_77 {dimension_numbers = #tpu.dot_dimension_numbers<[1], [0], [0], [1], [0, 0, 1, 1], [], []>} : vector<8x64xf32>, vector<64x128xf32>, vector<8x128xf32> -> vector<8x128xf32>
    %c0_78 = arith.constant 0 : index
    %c0_79 = arith.constant 0 : index
    %205 = vector.load %arg5[%c0_78, %c0_79] : memref<1x128xf32, #tpu.memory_space<vmem>>, vector<1x128xf32>
    %206 = vector.broadcast %205 : vector<1x128xf32> to vector<8x128xf32>
    %207 = arith.addf %204, %206 : vector<8x128xf32>
    %208 = arith.negf %207 : vector<8x128xf32>
    %209 = math.exp %208 : vector<8x128xf32>
    %cst_80 = arith.constant 1.000000e+00 : f32
    %210 = vector.broadcast %cst_80 : f32 to vector<8x128xf32>
    %211 = arith.addf %210, %209 : vector<8x128xf32>
    %212 = arith.divf %210, %211 : vector<8x128xf32>
    %c0_81 = arith.constant 0 : index
    %c0_82 = arith.constant 0 : index
    %213 = vector.load %arg6[%c0_81, %c0_82] : memref<8x128xf32, #tpu.memory_space<vmem>>, vector<8x128xf32>
    tpu.vector_store %arg6[%c0_81, %c0_82], %212 {strides = array<i32>} : memref<8x128xf32, #tpu.memory_space<vmem>>, vector<8x128xf32>,
    return
  }
}

</mosaic_0001>

<llo_original>
// kernel: tpu_custom_call.1
$region0: #{tpu_custom_call.1}
  #allocation0 [shape = 'u32[]', space=smem, size = 0x4, offset = 0x4, fixed_abs, tag = 'smem constant byte address 0x4 - core index']
  #allocation1 [shape = 'u32[144,128]{1,0:T(1,128)}', space=vmem, size = 0x12000, scoped, tag = 'internal scratch']
  #allocation2 [shape = 'f32[8,8,256]{2,1,0:T(8,128)}', space=vmem, size = 0x10000, scoped, tag = 'scratch operand']
  %s0 = inlined_call_operand.hbm [shape: f32[8,8,32], index: 0, kind: input, shape index: {}]
  %s1 = inlined_call_operand.hbm [shape: f32[32,256], index: 1, kind: input, shape index: {}]
  %s2 = inlined_call_operand.hbm [shape: f32[64,256], index: 2, kind: input, shape index: {}]
  %s3 = inlined_call_operand.vmem [shape: f32[1,256], index: 3, kind: input, shape index: {}]
  %s4 = inlined_call_operand.hbm [shape: f32[64,128], index: 4, kind: input, shape index: {}]
  %s5 = inlined_call_operand.vmem [shape: f32[1,128], index: 5, kind: input, shape index: {}]
  %s6 = inlined_call_operand.hbm [shape: f32[8,128], index: 6, kind: output, shape index: {}]
  %s7 = sld [smem:[#allocation0]]
  $region50: #{tpu_custom_call.1} parent=0
    _
  %s9 = ssub.s32 1, %s7
  %s10 = scalar_select 0, %s9, %s7
  $region1: #{tpu_custom_call.1} parent=0
    #allocation3 [shape = 'u8[32768]{0}', space=vmem, size = 0x8000, scoped, tag = 'input window, operand 0, single buffered']
    #allocation4 [shape = 's32[1]{0}', space=sflag, size = 0x4, scoped, tag = 'scoped memory for tpu_custom_call.1']
    #allocation5 [shape = 's32[1]{0}', space=sflag, size = 0x4, scoped, tag = 'scoped memory for tpu_custom_call.1']
    #allocation6 [shape = 'u8[32768]{0}', space=vmem, size = 0x8000, scoped, tag = 'input window, operand 1, single buffered']
    #allocation7 [shape = 's32[1]{0}', space=sflag, size = 0x4, scoped, tag = 'scoped memory for tpu_custom_call.1']
    #allocation8 [shape = 'u8[65536]{0}', space=vmem, size = 0x10000, scoped, tag = 'input window, operand 2, single buffered']
    #allocation9 [shape = 'u8[32768]{0}', space=vmem, size = 0x8000, scoped, tag = 'input window, operand 4, single buffered']
    #allocation10 [shape = 's32[1]{0}', space=sflag, size = 0x4, scoped, tag = 'scoped memory for tpu_custom_call.1']
    #allocation11 [shape = 'u8[4096]{0}', space=vmem, size = 0x1000, scoped, tag = 'output window, operand 0, single buffered']
    %11 = vsyncpa [#allocation4], 0
    %12 = vsyncpa [#allocation7], 0
    %13 = vsyncpa [#allocation10], 0
    %14 = vsyncpa [#allocation5], 0
    // Predicated region
    $region2: #{tpu_custom_call.1} parent=1 // pred_check
      _
    $region3: #{tpu_custom_call.1} parent=1 // pred_check_branch
      %16 = sbr.rel (0) target = $region5
    $region4: #{tpu_custom_call.1} parent=1 // pred_region
      %s18 = ssub.s32 1024, 1024
      %19 = vsyncadd [#allocation4], %s18
      %s20 = sshll.u32 [#allocation3], 4
      %s21 = int_to_ptr.vmem [resolvable:$true] %s20
      %26 = dma.hbm_to_vmem [thread:$0]  %s0, 1024, %s21, [#allocation4], 128, 128, 8
    $region5: #{tpu_custom_call.1} parent=1 // pred_fallthru
      _
    // Predicated region
    $region6: #{tpu_custom_call.1} parent=1 // pred_check
      _
    $region7: #{tpu_custom_call.1} parent=1 // pred_check_branch
      %28 = sbr.rel (0) target = $region9
    $region8: #{tpu_custom_call.1} parent=1 // pred_region
      %s30 = ssub.s32 1024, 1024
      %31 = vsyncadd [#allocation7], %s30
      %s32 = sshll.u32 [#allocation6], 4
      %s33 = int_to_ptr.vmem [resolvable:$true] %s32
      %38 = dma.hbm_to_vmem [thread:$0]  %s1, 1024, %s33, [#allocation7], 256, 256, 16
    $region9: #{tpu_custom_call.1} parent=1 // pred_fallthru
      _
    // Predicated region
    $region10: #{tpu_custom_call.1} parent=1 // pred_check
      _
    $region11: #{tpu_custom_call.1} parent=1 // pred_check_branch
      %40 = sbr.rel (0) target = $region13
    $region12: #{tpu_custom_call.1} parent=1 // pred_region
      %s42 = ssub.s32 2048, 2048
      %43 = vsyncadd [#allocation7], %s42
      %s44 = sshll.u32 [#allocation8], 4
      %s45 = int_to_ptr.vmem [resolvable:$true] %s44
      %50 = dma.hbm_to_vmem [thread:$0]  %s2, 2048, %s45, [#allocation7], 256, 256, 16
    $region13: #{tpu_custom_call.1} parent=1 // pred_fallthru
      _
    // Predicated region
    $region14: #{tpu_custom_call.1} parent=1 // pred_check
      _
    $region15: #{tpu_custom_call.1} parent=1 // pred_check_branch
      %52 = sbr.rel (0) target = $region17
    $region16: #{tpu_custom_call.1} parent=1 // pred_region
      _
    $region17: #{tpu_custom_call.1} parent=1 // pred_fallthru
      _
    // Predicated region
    $region18: #{tpu_custom_call.1} parent=1 // pred_check
      _
    $region19: #{tpu_custom_call.1} parent=1 // pred_check_branch
      %54 = sbr.rel (0) target = $region21
    $region20: #{tpu_custom_call.1} parent=1 // pred_region
      %s56 = ssub.s32 1024, 1024
      %57 = vsyncadd [#allocation10], %s56
      %s58 = sshll.u32 [#allocation9], 4
      %s59 = int_to_ptr.vmem [resolvable:$true] %s58
      %64 = dma.hbm_to_vmem [thread:$0]  %s4, 1024, %s59, [#allocation10], 128, 128, 8
    $region21: #{tpu_custom_call.1} parent=1 // pred_fallthru
      _
    // Predicated region
    $region22: #{tpu_custom_call.1} parent=1 // pred_check
      _
    $region23: #{tpu_custom_call.1} parent=1 // pred_check_branch
      %66 = sbr.rel (0) target = $region25
    $region24: #{tpu_custom_call.1} parent=1 // pred_region
      _
    $region25: #{tpu_custom_call.1} parent=1 // pred_fallthru
      _
    // Predicated region
    $region26: #{tpu_custom_call.1} parent=1 // pred_check
      _
    $region27: #{tpu_custom_call.1} parent=1 // pred_check_branch
      %68 = sbr.rel (0) target = $region29
    $region28: #{tpu_custom_call.1} parent=1 // pred_region
      %69 = dma.done [#allocation4], 1024
    $region29: #{tpu_custom_call.1} parent=1 // pred_fallthru
      _
    // Predicated region
    $region30: #{tpu_custom_call.1} parent=1 // pred_check
      _
    $region31: #{tpu_custom_call.1} parent=1 // pred_check_branch
      %71 = sbr.rel (0) target = $region33
    $region32: #{tpu_custom_call.1} parent=1 // pred_region
      %72 = dma.done [#allocation7], 1024
    $region33: #{tpu_custom_call.1} parent=1 // pred_fallthru
      _
    // Predicated region
    $region34: #{tpu_custom_call.1} parent=1 // pred_check
      _
    $region35: #{tpu_custom_call.1} parent=1 // pred_check_branch
      %74 = sbr.rel (0) target = $region37
    $region36: #{tpu_custom_call.1} parent=1 // pred_region
      %75 = dma.done [#allocation7], 2048
    $region37: #{tpu_custom_call.1} parent=1 // pred_fallthru
      _
    // Predicated region
    $region38: #{tpu_custom_call.1} parent=1 // pred_check
      _
    $region39: #{tpu_custom_call.1} parent=1 // pred_check_branch
      %77 = sbr.rel (0) target = $region41
    $region40: #{tpu_custom_call.1} parent=1 // pred_region
      %78 = dma.done [#allocation10], 1024
    $region41: #{tpu_custom_call.1} parent=1 // pred_fallthru
      _
    %v79 = vld [vmem:[#allocation3] sm:$0xff]
    %v80 = vld [vmem:[#allocation3 + $0x8] sm:$0xff]
    %v81 = vld [vmem:[#allocation3 + $0x10] sm:$0xff]
    %v82 = vld [vmem:[#allocation3 + $0x18] sm:$0xff]
    %v83 = vld [vmem:[#allocation3 + $0x20] sm:$0xff]
    %v84 = vld [vmem:[#allocation3 + $0x28] sm:$0xff]
    %v85 = vld [vmem:[#allocation3 + $0x30] sm:$0xff]
    %v86 = vld [vmem:[#allocation3 + $0x38] sm:$0xff]
    %v87 = vld [vmem:[#allocation6] sm:$0xff]
    %v88 = vld [vmem:[#allocation6 + $0x8] sm:$0xff]
    %v89 = vld [vmem:[#allocation6 + $0x10] sm:$0xff]
    %v90 = vld [vmem:[#allocation6 + $0x18] sm:$0xff]
    %v91 = vld [vmem:[#allocation6 + $0x20] sm:$0xff]
    %v92 = vld [vmem:[#allocation6 + $0x28] sm:$0xff]
    %v93 = vld [vmem:[#allocation6 + $0x30] sm:$0xff]
    %v94 = vld [vmem:[#allocation6 + $0x38] sm:$0xff]
    %v95 = vld [vmem:[%s3] sm:$0x3]
    %v97 = vlaneseq
    %v98 = vshrl.u32 %v97, 7
    %v99 = vsub.s32 0, %v98
    %v100 = vrot.slane %v95, %v99
    %v101 = vlaneseq
    %v102 = vshrl.u32 %v101, 7
    %v103 = vsub.s32 1, %v102
    %v104 = vrot.slane %v95, %v103
    %vm107 = vcmask 261120
    %v109 = vsel %vm107, %v79, 0
    %v112 = vsel %vm107, %v80, 0
    %v115 = vsel %vm107, %v81, 0
    %v118 = vsel %vm107, %v82, 0
    %v121 = vsel %vm107, %v83, 0
    %v124 = vsel %vm107, %v84, 0
    %v127 = vsel %vm107, %v85, 0
    %v130 = vsel %vm107, %v86, 0
    %132 = vmatprep.subr.mxu0 %v88
    %133 = vmatpush1.msra.mxu0 %v87
    %134 = vmatprep.subr.mxu0 %v90
    %135 = vmatpush1.msra.mxu0 %v89
    %136 = vmatprep.subr.mxu0 %v92
    %137 = vmatpush1.msra.mxu0 %v91
    %138 = vmatprep.subr.mxu0 %v94
    %139 = vmatpush1.msra.mxu0 %v93
    %140 = vmatprep.subr.mxu0 0.0
    %141 = vmatpush1.msra.mxu0 0.0
    %142 = vmatprep.subr.mxu0 0.0
    %143 = vmatpush1.msra.mxu0 0.0
    %144 = vmatprep.subr.mxu0 0.0
    %145 = vmatpush1.msra.mxu0 0.0
    %146 = vmatprep.subr.mxu0 0.0
    %147 = vmatpush1.msra.mxu0 0.0
    %148 = vmatprep.subr.mxu0 0.0
    %149 = vmatpush1.msra.mxu0 0.0
    %150 = vmatprep.subr.mxu0 0.0
    %151 = vmatpush1.msra.mxu0 0.0
    %152 = vmatprep.subr.mxu0 0.0
    %153 = vmatpush1.msra.mxu0 0.0
    %154 = vmatprep.subr.mxu0 0.0
    %155 = vmatpush1.msra.mxu0 0.0
    %156 = vmatprep.subr.mxu0 0.0
    %157 = vmatpush1.msra.mxu0 0.0
    %158 = vmatprep.subr.mxu0 0.0
    %159 = vmatpush1.msra.mxu0 0.0
    %160 = vmatprep.subr.mxu0 0.0
    %161 = vmatpush1.msra.mxu0 0.0
    %162 = vmatprep.subr.mxu0 0.0
    %163 = vmatpush1.msra.mxu0 0.0
    %164 = vmatprep.subr.mxu0 0.0
    %165 = vmatpush1.msra.mxu0 0.0
    %166 = vmatprep.subr.mxu0 0.0
    %167 = vmatpush1.msra.mxu0 0.0
    %168 = vmatprep.subr.mxu0 0.0
    %169 = vmatpush1.msra.mxu0 0.0
    %170 = vmatprep.subr.mxu0 0.0
    %171 = vmatpush1.msra.mxu0 0.0
    %172 = vmatprep.subr.mxu0 0.0
    %173 = vmatpush1.msra.mxu0 0.0
    %174 = vmatprep.subr.mxu0 0.0
    %175 = vmatpush1.msra.mxu0 0.0
    %176 = vmatprep.subr.mxu0 0.0
    %177 = vmatpush1.msra.mxu0 0.0
    %178 = vmatprep.subr.mxu0 0.0
    %179 = vmatpush1.msra.mxu0 0.0
    %180 = vmatprep.subr.mxu0 0.0
    %181 = vmatpush1.msra.mxu0 0.0
    %182 = vmatprep.subr.mxu0 0.0
    %183 = vmatpush1.msra.mxu0 0.0
    %184 = vmatprep.subr.mxu0 0.0
    %185 = vmatpush1.msra.mxu0 0.0
    %186 = vmatprep.subr.mxu0 0.0
    %187 = vmatpush1.msra.mxu0 0.0
    %188 = vmatprep.subr.mxu0 0.0
    %189 = vmatpush1.msra.mxu0 0.0
    %190 = vmatprep.subr.mxu0 0.0
    %191 = vmatpush1.msra.mxu0 0.0
    %192 = vmatprep.subr.mxu0 0.0
    %193 = vmatpush1.msra.mxu0 0.0
    %194 = vmatprep.subr.mxu0 0.0
    %195 = vmatpush1.msra.mxu0 0.0
    %196 = vmatprep.mubr.f32.mxu0 0.0
    %197 = vmatmul.mubr.f32.gmra.mrb[0].mxu0 %v109
    %v198 = vpop.f32.mrb[0].mxu0
    %v199 = vadd.f32 %v100, %v198
    %v200 = vpop.f32.mrb[0].mxu0
    %v201 = vadd.f32 %v104, %v200
    %202 = vmatprep.mubr.f32.mxu0 0.0
    %203 = vmatmul.mubr.f32.gmra.mrb[0].mxu0 %v112
    %v204 = vpop.f32.mrb[0].mxu0
    %v205 = vadd.f32 %v100, %v204
    %v206 = vpop.f32.mrb[0].mxu0
    %v207 = vadd.f32 %v104, %v206
    %208 = vmatprep.mubr.f32.mxu0 0.0
    %209 = vmatmul.mubr.f32.gmra.mrb[0].mxu0 %v115
    %v210 = vpop.f32.mrb[0].mxu0
    %v211 = vadd.f32 %v100, %v210
    %v212 = vpop.f32.mrb[0].mxu0
    %v213 = vadd.f32 %v104, %v212
    %214 = vmatprep.mubr.f32.mxu0 0.0
    %215 = vmatmul.mubr.f32.gmra.mrb[0].mxu0 %v118
    %v216 = vpop.f32.mrb[0].mxu0
    %v217 = vadd.f32 %v100, %v216
    %v218 = vpop.f32.mrb[0].mxu0
    %v219 = vadd.f32 %v104, %v218
    %220 = vmatprep.mubr.f32.mxu0 0.0
    %221 = vmatmul.mubr.f32.gmra.mrb[0].mxu0 %v121
    %v222 = vpop.f32.mrb[0].mxu0
    %v223 = vadd.f32 %v100, %v222
    %v224 = vpop.f32.mrb[0].mxu0
    %v225 = vadd.f32 %v104, %v224
    %226 = vmatprep.mubr.f32.mxu0 0.0
    %227 = vmatmul.mubr.f32.gmra.mrb[0].mxu0 %v124
    %v228 = vpop.f32.mrb[0].mxu0
    %v229 = vadd.f32 %v100, %v228
    %v230 = vpop.f32.mrb[0].mxu0
    %v231 = vadd.f32 %v104, %v230
    %232 = vmatprep.mubr.f32.mxu0 0.0
    %233 = vmatmul.mubr.f32.gmra.mrb[0].mxu0 %v127
    %v234 = vpop.f32.mrb[0].mxu0
    %v235 = vadd.f32 %v100, %v234
    %v236 = vpop.f32.mrb[0].mxu0
    %v237 = vadd.f32 %v104, %v236
    %238 = vmatprep.mubr.f32.mxu0 0.0
    %239 = vmatmul.mubr.f32.gmra.mrb[0].mxu0 %v130
    %v240 = vpop.f32.mrb[0].mxu0
    %v241 = vadd.f32 %v100, %v240
    %v242 = vpop.f32.mrb[0].mxu0
    %v243 = vadd.f32 %v104, %v242
    %244 = vdwg.mxu0
    %245 = vst [vmem:[#allocation2] sm:$0xff] %v199
    %246 = vst [vmem:[#allocation2 + $0x8] sm:$0xff] %v201
    %247 = vst [vmem:[#allocation2 + $0x10] sm:$0xff] %v205
    %248 = vst [vmem:[#allocation2 + $0x18] sm:$0xff] %v207
    %249 = vst [vmem:[#allocation2 + $0x20] sm:$0xff] %v211
    %250 = vst [vmem:[#allocation2 + $0x28] sm:$0xff] %v213
    %251 = vst [vmem:[#allocation2 + $0x30] sm:$0xff] %v217
    %252 = vst [vmem:[#allocation2 + $0x38] sm:$0xff] %v219
    %253 = vst [vmem:[#allocation2 + $0x40] sm:$0xff] %v223
    %254 = vst [vmem:[#allocation2 + $0x48] sm:$0xff] %v225
    %255 = vst [vmem:[#allocation2 + $0x50] sm:$0xff] %v229
    %256 = vst [vmem:[#allocation2 + $0x58] sm:$0xff] %v231
    %257 = vst [vmem:[#allocation2 + $0x60] sm:$0xff] %v235
    %258 = vst [vmem:[#allocation2 + $0x68] sm:$0xff] %v237
    %259 = vst [vmem:[#allocation2 + $0x70] sm:$0xff] %v241
    %260 = vst [vmem:[#allocation2 + $0x78] sm:$0xff] %v243
    %v261 = vld [vmem:[#allocation2] sm:$0xff]
    %v262 = vld [vmem:[#allocation2 + $0x8] sm:$0xff]
    %v263 = vld [vmem:[#allocation8] sm:$0xff]
    %v264 = vld [vmem:[#allocation8 + $0x8] sm:$0xff]
    %v265 = vld [vmem:[#allocation8 + $0x10] sm:$0xff]
    %v266 = vld [vmem:[#allocation8 + $0x18] sm:$0xff]
    %v267 = vld [vmem:[#allocation8 + $0x20] sm:$0xff]
    %v268 = vld [vmem:[#allocation8 + $0x28] sm:$0xff]
    %v269 = vld [vmem:[#allocation8 + $0x30] sm:$0xff]
    %v270 = vld [vmem:[#allocation8 + $0x38] sm:$0xff]
    %v271 = vld [vmem:[#allocation8 + $0x40] sm:$0xff]
    %v272 = vld [vmem:[#allocation8 + $0x48] sm:$0xff]
    %v273 = vld [vmem:[#allocation8 + $0x50] sm:$0xff]
    %v274 = vld [vmem:[#allocation8 + $0x58] sm:$0xff]
    %v275 = vld [vmem:[#allocation8 + $0x60] sm:$0xff]
    %v276 = vld [vmem:[#allocation8 + $0x68] sm:$0xff]
    %v277 = vld [vmem:[#allocation8 + $0x70] sm:$0xff]
    %v278 = vld [vmem:[#allocation8 + $0x78] sm:$0xff]
    %vm279 = vcmask 523264
    %v281 = vsel %vm279, 0.0, 0
    %283 = vmatprep.subr.mxu0 %v264
    %284 = vmatpush1.msra.mxu0 %v263
    %285 = vmatprep.subr.mxu0 %v266
    %286 = vmatpush1.msra.mxu0 %v265
    %287 = vmatprep.subr.mxu0 %v268
    %288 = vmatpush1.msra.mxu0 %v267
    %289 = vmatprep.subr.mxu0 %v270
    %290 = vmatpush1.msra.mxu0 %v269
    %291 = vmatprep.subr.mxu0 %v272
    %292 = vmatpush1.msra.mxu0 %v271
    %293 = vmatprep.subr.mxu0 %v274
    %294 = vmatpush1.msra.mxu0 %v273
    %295 = vmatprep.subr.mxu0 %v276
    %296 = vmatpush1.msra.mxu0 %v275
    %297 = vmatprep.subr.mxu0 %v278
    %298 = vmatpush1.msra.mxu0 %v277
    %299 = vmatprep.subr.mxu0 0.0
    %300 = vmatpush1.msra.mxu0 0.0
    %301 = vmatprep.subr.mxu0 0.0
    %302 = vmatpush1.msra.mxu0 0.0
    %303 = vmatprep.subr.mxu0 0.0
    %304 = vmatpush1.msra.mxu0 0.0
    %305 = vmatprep.subr.mxu0 0.0
    %306 = vmatpush1.msra.mxu0 0.0
    %307 = vmatprep.subr.mxu0 0.0
    %308 = vmatpush1.msra.mxu0 0.0
    %309 = vmatprep.subr.mxu0 0.0
    %310 = vmatpush1.msra.mxu0 0.0
    %311 = vmatprep.subr.mxu0 0.0
    %312 = vmatpush1.msra.mxu0 0.0
    %313 = vmatprep.subr.mxu0 0.0
    %314 = vmatpush1.msra.mxu0 0.0
    %315 = vmatprep.subr.mxu0 0.0
    %316 = vmatpush1.msra.mxu0 0.0
    %317 = vmatprep.subr.mxu0 0.0
    %318 = vmatpush1.msra.mxu0 0.0
    %319 = vmatprep.subr.mxu0 0.0
    %320 = vmatpush1.msra.mxu0 0.0
    %321 = vmatprep.subr.mxu0 0.0
    %322 = vmatpush1.msra.mxu0 0.0
    %323 = vmatprep.subr.mxu0 0.0
    %324 = vmatpush1.msra.mxu0 0.0
    %325 = vmatprep.subr.mxu0 0.0
    %326 = vmatpush1.msra.mxu0 0.0
    %327 = vmatprep.subr.mxu0 0.0
    %328 = vmatpush1.msra.mxu0 0.0
    %329 = vmatprep.subr.mxu0 0.0
    %330 = vmatpush1.msra.mxu0 0.0
    %331 = vmatprep.subr.mxu0 0.0
    %332 = vmatpush1.msra.mxu0 0.0
    %333 = vmatprep.subr.mxu0 0.0
    %334 = vmatpush1.msra.mxu0 0.0
    %335 = vmatprep.subr.mxu0 0.0
    %336 = vmatpush1.msra.mxu0 0.0
    %337 = vmatprep.subr.mxu0 0.0
    %338 = vmatpush1.msra.mxu0 0.0
    %339 = vmatprep.subr.mxu0 0.0
    %340 = vmatpush1.msra.mxu0 0.0
    %341 = vmatprep.subr.mxu0 0.0
    %342 = vmatpush1.msra.mxu0 0.0
    %343 = vmatprep.subr.mxu0 0.0
    %344 = vmatpush1.msra.mxu0 0.0
    %345 = vmatprep.subr.mxu0 0.0
    %346 = vmatpush1.msra.mxu0 0.0
    %347 = vmatprep.mubr.f32.mxu0 0.0
    %348 = vmatmul.mubr.f32.gmra.mrb[0].mxu0 %v281
    %v349 = vpop.f32.mrb[0].mxu0
    %v350 = vadd.f32 0.0, %v349
    %v351 = vpop.f32.mrb[0].mxu0
    %v352 = vadd.f32 0.0, %v351
    %353 = vdwg.mxu0
    %v354 = vadd.f32 %v261, %v350
    %v355 = vadd.f32 %v262, %v352
    %v356 = vxor.u32 %v354, 2147483648
    %v357 = vxor.u32 %v355, 2147483648
    %v358 = vmul.f32 %v356, 1.442695
    %v359 = vpow.pop %v358
    %v360 = vmul.f32 %v357, 1.442695
    %v361 = vpow.pop %v360
    %v362 = vadd.f32 %v359, 1.0
    %v363 = vadd.f32 %v361, 1.0
    %v364 = vrcp.pop %v362
    %v365 = vmul.f32 1.0, %v364
    %v366 = vrcp.pop %v363
    %v367 = vmul.f32 1.0, %v366
    %v368 = vmul.f32 %v367, 2.0
    %v369 = vsub.f32 %v368, 1.0
    %v370 = vmul.f32 %v365, 0.0
    %372 = vrot.lane.b32.xlu0 %v369, 64
    %v373 = vpop.permute.xlu0 %372
    %v375 = vmul.f32 %v365, %v373
    %377 = vrot.lane.b32.xlu0 %v375, 64
    %v378 = vpop.permute.xlu0 %377
    %v380 = vadd.f32 %v370, %v378
    %v381 = vtanh.pop %v380
    %383 = vrot.lane.b32.xlu0 %v381, 64
    %v384 = vpop.permute.xlu0 %383
    %v386 = vmul.f32 %v367, %v384
    %s387 = scalar_lea.vmem [#allocation2], 16
    %v388 = vld [vmem:[%s387] sm:$0xff]
    %v389 = vld [vmem:[%s387 + $0x8] sm:$0xff]
    %v391 = vsel %vm279, %v386, 0
    %393 = vmatprep.subr.mxu0 %v264
    %394 = vmatpush1.msra.mxu0 %v263
    %395 = vmatprep.subr.mxu0 %v266
    %396 = vmatpush1.msra.mxu0 %v265
    %397 = vmatprep.subr.mxu0 %v268
    %398 = vmatpush1.msra.mxu0 %v267
    %399 = vmatprep.subr.mxu0 %v270
    %400 = vmatpush1.msra.mxu0 %v269
    %401 = vmatprep.subr.mxu0 %v272
    %402 = vmatpush1.msra.mxu0 %v271
    %403 = vmatprep.subr.mxu0 %v274
    %404 = vmatpush1.msra.mxu0 %v273
    %405 = vmatprep.subr.mxu0 %v276
    %406 = vmatpush1.msra.mxu0 %v275
    %407 = vmatprep.subr.mxu0 %v278
    %408 = vmatpush1.msra.mxu0 %v277
    %409 = vmatprep.subr.mxu0 0.0
    %410 = vmatpush1.msra.mxu0 0.0
    %411 = vmatprep.subr.mxu0 0.0
    %412 = vmatpush1.msra.mxu0 0.0
    %413 = vmatprep.subr.mxu0 0.0
    %414 = vmatpush1.msra.mxu0 0.0
    %415 = vmatprep.subr.mxu0 0.0
    %416 = vmatpush1.msra.mxu0 0.0
    %417 = vmatprep.subr.mxu0 0.0
    %418 = vmatpush1.msra.mxu0 0.0
    %419 = vmatprep.subr.mxu0 0.0
    %420 = vmatpush1.msra.mxu0 0.0
    %421 = vmatprep.subr.mxu0 0.0
    %422 = vmatpush1.msra.mxu0 0.0
    %423 = vmatprep.subr.mxu0 0.0
    %424 = vmatpush1.msra.mxu0 0.0
    %425 = vmatprep.subr.mxu0 0.0
    %426 = vmatpush1.msra.mxu0 0.0
    %427 = vmatprep.subr.mxu0 0.0
    %428 = vmatpush1.msra.mxu0 0.0
    %429 = vmatprep.subr.mxu0 0.0
    %430 = vmatpush1.msra.mxu0 0.0
    %431 = vmatprep.subr.mxu0 0.0
    %432 = vmatpush1.msra.mxu0 0.0
    %433 = vmatprep.subr.mxu0 0.0
    %434 = vmatpush1.msra.mxu0 0.0
    %435 = vmatprep.subr.mxu0 0.0
    %436 = vmatpush1.msra.mxu0 0.0
    %437 = vmatprep.subr.mxu0 0.0
    %438 = vmatpush1.msra.mxu0 0.0
    %439 = vmatprep.subr.mxu0 0.0
    %440 = vmatpush1.msra.mxu0 0.0
    %441 = vmatprep.subr.mxu0 0.0
    %442 = vmatpush1.msra.mxu0 0.0
    %443 = vmatprep.subr.mxu0 0.0
    %444 = vmatpush1.msra.mxu0 0.0
    %445 = vmatprep.subr.mxu0 0.0
    %446 = vmatpush1.msra.mxu0 0.0
    %447 = vmatprep.subr.mxu0 0.0
    %448 = vmatpush1.msra.mxu0 0.0
    %449 = vmatprep.subr.mxu0 0.0
    %450 = vmatpush1.msra.mxu0 0.0
    %451 = vmatprep.subr.mxu0 0.0
    %452 = vmatpush1.msra.mxu0 0.0
    %453 = vmatprep.subr.mxu0 0.0
    %454 = vmatpush1.msra.mxu0 0.0
    %455 = vmatprep.subr.mxu0 0.0
    %456 = vmatpush1.msra.mxu0 0.0
    %457 = vmatprep.mubr.f32.mxu0 0.0
    %458 = vmatmul.mubr.f32.gmra.mrb[0].mxu0 %v391
    %v459 = vpop.f32.mrb[0].mxu0
    %v460 = vadd.f32 0.0, %v459
    %v461 = vpop.f32.mrb[0].mxu0
    %v462 = vadd.f32 0.0, %v461
    %463 = vdwg.mxu0
    %v464 = vadd.f32 %v388, %v460
    %v465 = vadd.f32 %v389, %v462
    %v466 = vxor.u32 %v464, 2147483648
    %v467 = vxor.u32 %v465, 2147483648
    %v468 = vmul.f32 %v466, 1.442695
    %v469 = vpow.pop %v468
    %v470 = vmul.f32 %v467, 1.442695
    %v471 = vpow.pop %v470
    %v472 = vadd.f32 %v469, 1.0
    %v473 = vadd.f32 %v471, 1.0
    %v474 = vrcp.pop %v472
    %v475 = vmul.f32 1.0, %v474
    %v476 = vrcp.pop %v473
    %v477 = vmul.f32 1.0, %v476
    %v478 = vmul.f32 %v477, 2.0
    %v479 = vsub.f32 %v478, 1.0
    %v480 = vmul.f32 %v475, %v380
    %482 = vrot.lane.b32.xlu0 %v479, 64
    %v483 = vpop.permute.xlu0 %482
    %v485 = vmul.f32 %v475, %v483
    %487 = vrot.lane.b32.xlu0 %v485, 64
    %v488 = vpop.permute.xlu0 %487
    %v490 = vadd.f32 %v480, %v488
    %v491 = vtanh.pop %v490
    %493 = vrot.lane.b32.xlu0 %v491, 64
    %v494 = vpop.permute.xlu0 %493
    %v496 = vmul.f32 %v477, %v494
    %s497 = scalar_lea.vmem [#allocation2], 32
    %v498 = vld [vmem:[%s497] sm:$0xff]
    %v499 = vld [vmem:[%s497 + $0x8] sm:$0xff]
    %v501 = vsel %vm279, %v496, 0
    %503 = vmatprep.subr.mxu0 %v264
    %504 = vmatpush1.msra.mxu0 %v263
    %505 = vmatprep.subr.mxu0 %v266
    %506 = vmatpush1.msra.mxu0 %v265
    %507 = vmatprep.subr.mxu0 %v268
    %508 = vmatpush1.msra.mxu0 %v267
    %509 = vmatprep.subr.mxu0 %v270
    %510 = vmatpush1.msra.mxu0 %v269
    %511 = vmatprep.subr.mxu0 %v272
    %512 = vmatpush1.msra.mxu0 %v271
    %513 = vmatprep.subr.mxu0 %v274
    %514 = vmatpush1.msra.mxu0 %v273
    %515 = vmatprep.subr.mxu0 %v276
    %516 = vmatpush1.msra.mxu0 %v275
    %517 = vmatprep.subr.mxu0 %v278
    %518 = vmatpush1.msra.mxu0 %v277
    %519 = vmatprep.subr.mxu0 0.0
    %520 = vmatpush1.msra.mxu0 0.0
    %521 = vmatprep.subr.mxu0 0.0
    %522 = vmatpush1.msra.mxu0 0.0
    %523 = vmatprep.subr.mxu0 0.0
    %524 = vmatpush1.msra.mxu0 0.0
    %525 = vmatprep.subr.mxu0 0.0
    %526 = vmatpush1.msra.mxu0 0.0
    %527 = vmatprep.subr.mxu0 0.0
    %528 = vmatpush1.msra.mxu0 0.0
    %529 = vmatprep.subr.mxu0 0.0
    %530 = vmatpush1.msra.mxu0 0.0
    %531 = vmatprep.subr.mxu0 0.0
    %532 = vmatpush1.msra.mxu0 0.0
    %533 = vmatprep.subr.mxu0 0.0
    %534 = vmatpush1.msra.mxu0 0.0
    %535 = vmatprep.subr.mxu0 0.0
    %536 = vmatpush1.msra.mxu0 0.0
    %537 = vmatprep.subr.mxu0 0.0
    %538 = vmatpush1.msra.mxu0 0.0
    %539 = vmatprep.subr.mxu0 0.0
    %540 = vmatpush1.msra.mxu0 0.0
    %541 = vmatprep.subr.mxu0 0.0
    %542 = vmatpush1.msra.mxu0 0.0
    %543 = vmatprep.subr.mxu0 0.0
    %544 = vmatpush1.msra.mxu0 0.0
    %545 = vmatprep.subr.mxu0 0.0
    %546 = vmatpush1.msra.mxu0 0.0
    %547 = vmatprep.subr.mxu0 0.0
    %548 = vmatpush1.msra.mxu0 0.0
    %549 = vmatprep.subr.mxu0 0.0
    %550 = vmatpush1.msra.mxu0 0.0
    %551 = vmatprep.subr.mxu0 0.0
    %552 = vmatpush1.msra.mxu0 0.0
    %553 = vmatprep.subr.mxu0 0.0
    %554 = vmatpush1.msra.mxu0 0.0
    %555 = vmatprep.subr.mxu0 0.0
    %556 = vmatpush1.msra.mxu0 0.0
    %557 = vmatprep.subr.mxu0 0.0
    %558 = vmatpush1.msra.mxu0 0.0
    %559 = vmatprep.subr.mxu0 0.0
    %560 = vmatpush1.msra.mxu0 0.0
    %561 = vmatprep.subr.mxu0 0.0
    %562 = vmatpush1.msra.mxu0 0.0
    %563 = vmatprep.subr.mxu0 0.0
    %564 = vmatpush1.msra.mxu0 0.0
    %565 = vmatprep.subr.mxu0 0.0
    %566 = vmatpush1.msra.mxu0 0.0
    %567 = vmatprep.mubr.f32.mxu0 0.0
    %568 = vmatmul.mubr.f32.gmra.mrb[0].mxu0 %v501
    %v569 = vpop.f32.mrb[0].mxu0
    %v570 = vadd.f32 0.0, %v569
    %v571 = vpop.f32.mrb[0].mxu0
    %v572 = vadd.f32 0.0, %v571
    %573 = vdwg.mxu0
    %v574 = vadd.f32 %v498, %v570
    %v575 = vadd.f32 %v499, %v572
    %v576 = vxor.u32 %v574, 2147483648
    %v577 = vxor.u32 %v575, 2147483648
    %v578 = vmul.f32 %v576, 1.442695
    %v579 = vpow.pop %v578
    %v580 = vmul.f32 %v577, 1.442695
    %v581 = vpow.pop %v580
    %v582 = vadd.f32 %v579, 1.0
    %v583 = vadd.f32 %v581, 1.0
    %v584 = vrcp.pop %v582
    %v585 = vmul.f32 1.0, %v584
    %v586 = vrcp.pop %v583
    %v587 = vmul.f32 1.0, %v586
    %v588 = vmul.f32 %v587, 2.0
    %v589 = vsub.f32 %v588, 1.0
    %v590 = vmul.f32 %v585, %v490
    %592 = vrot.lane.b32.xlu0 %v589, 64
    %v593 = vpop.permute.xlu0 %592
    %v595 = vmul.f32 %v585, %v593
    %597 = vrot.lane.b32.xlu0 %v595, 64
    %v598 = vpop.permute.xlu0 %597
    %v600 = vadd.f32 %v590, %v598
    %v601 = vtanh.pop %v600
    %603 = vrot.lane.b32.xlu0 %v601, 64
    %v604 = vpop.permute.xlu0 %603
    %v606 = vmul.f32 %v587, %v604
    %s607 = scalar_lea.vmem [#allocation2], 48
    %v608 = vld [vmem:[%s607] sm:$0xff]
    %v609 = vld [vmem:[%s607 + $0x8] sm:$0xff]
    %v611 = vsel %vm279, %v606, 0
    %613 = vmatprep.subr.mxu0 %v264
    %614 = vmatpush1.msra.mxu0 %v263
    %615 = vmatprep.subr.mxu0 %v266
    %616 = vmatpush1.msra.mxu0 %v265
    %617 = vmatprep.subr.mxu0 %v268
    %618 = vmatpush1.msra.mxu0 %v267
    %619 = vmatprep.subr.mxu0 %v270
    %620 = vmatpush1.msra.mxu0 %v269
    %621 = vmatprep.subr.mxu0 %v272
    %622 = vmatpush1.msra.mxu0 %v271
    %623 = vmatprep.subr.mxu0 %v274
    %624 = vmatpush1.msra.mxu0 %v273
    %625 = vmatprep.subr.mxu0 %v276
    %626 = vmatpush1.msra.mxu0 %v275
    %627 = vmatprep.subr.mxu0 %v278
    %628 = vmatpush1.msra.mxu0 %v277
    %629 = vmatprep.subr.mxu0 0.0
    %630 = vmatpush1.msra.mxu0 0.0
    %631 = vmatprep.subr.mxu0 0.0
    %632 = vmatpush1.msra.mxu0 0.0
    %633 = vmatprep.subr.mxu0 0.0
    %634 = vmatpush1.msra.mxu0 0.0
    %635 = vmatprep.subr.mxu0 0.0
    %636 = vmatpush1.msra.mxu0 0.0
    %637 = vmatprep.subr.mxu0 0.0
    %638 = vmatpush1.msra.mxu0 0.0
    %639 = vmatprep.subr.mxu0 0.0
    %640 = vmatpush1.msra.mxu0 0.0
    %641 = vmatprep.subr.mxu0 0.0
    %642 = vmatpush1.msra.mxu0 0.0
    %643 = vmatprep.subr.mxu0 0.0
    %644 = vmatpush1.msra.mxu0 0.0
    %645 = vmatprep.subr.mxu0 0.0
    %646 = vmatpush1.msra.mxu0 0.0
    %647 = vmatprep.subr.mxu0 0.0
    %648 = vmatpush1.msra.mxu0 0.0
    %649 = vmatprep.subr.mxu0 0.0
    %650 = vmatpush1.msra.mxu0 0.0
    %651 = vmatprep.subr.mxu0 0.0
    %652 = vmatpush1.msra.mxu0 0.0
    %653 = vmatprep.subr.mxu0 0.0
    %654 = vmatpush1.msra.mxu0 0.0
    %655 = vmatprep.subr.mxu0 0.0
    %656 = vmatpush1.msra.mxu0 0.0
    %657 = vmatprep.subr.mxu0 0.0
    %658 = vmatpush1.msra.mxu0 0.0
    %659 = vmatprep.subr.mxu0 0.0
    %660 = vmatpush1.msra.mxu0 0.0
    %661 = vmatprep.subr.mxu0 0.0
    %662 = vmatpush1.msra.mxu0 0.0
    %663 = vmatprep.subr.mxu0 0.0
    %664 = vmatpush1.msra.mxu0 0.0
    %665 = vmatprep.subr.mxu0 0.0
    %666 = vmatpush1.msra.mxu0 0.0
    %667 = vmatprep.subr.mxu0 0.0
    %668 = vmatpush1.msra.mxu0 0.0
    %669 = vmatprep.subr.mxu0 0.0
    %670 = vmatpush1.msra.mxu0 0.0
    %671 = vmatprep.subr.mxu0 0.0
    %672 = vmatpush1.msra.mxu0 0.0
    %673 = vmatprep.subr.mxu0 0.0
    %674 = vmatpush1.msra.mxu0 0.0
    %675 = vmatprep.subr.mxu0 0.0
    %676 = vmatpush1.msra.mxu0 0.0
    %677 = vmatprep.mubr.f32.mxu0 0.0
    %678 = vmatmul.mubr.f32.gmra.mrb[0].mxu0 %v611
    %v679 = vpop.f32.mrb[0].mxu0
    %v680 = vadd.f32 0.0, %v679
    %v681 = vpop.f32.mrb[0].mxu0
    %v682 = vadd.f32 0.0, %v681
    %683 = vdwg.mxu0
    %v684 = vadd.f32 %v608, %v680
    %v685 = vadd.f32 %v609, %v682
    %v686 = vxor.u32 %v684, 2147483648
    %v687 = vxor.u32 %v685, 2147483648
    %v688 = vmul.f32 %v686, 1.442695
    %v689 = vpow.pop %v688
    %v690 = vmul.f32 %v687, 1.442695
    %v691 = vpow.pop %v690
    %v692 = vadd.f32 %v689, 1.0
    %v693 = vadd.f32 %v691, 1.0
    %v694 = vrcp.pop %v692
    %v695 = vmul.f32 1.0, %v694
    %v696 = vrcp.pop %v693
    %v697 = vmul.f32 1.0, %v696
    %v698 = vmul.f32 %v697, 2.0
    %v699 = vsub.f32 %v698, 1.0
    %v700 = vmul.f32 %v695, %v600
    %702 = vrot.lane.b32.xlu0 %v699, 64
    %v703 = vpop.permute.xlu0 %702
    %v705 = vmul.f32 %v695, %v703
    %707 = vrot.lane.b32.xlu0 %v705, 64
    %v708 = vpop.permute.xlu0 %707
    %v710 = vadd.f32 %v700, %v708
    %v711 = vtanh.pop %v710
    %713 = vrot.lane.b32.xlu0 %v711, 64
    %v714 = vpop.permute.xlu0 %713
    %v716 = vmul.f32 %v697, %v714
    %s717 = scalar_lea.vmem [#allocation2], 64
    %v718 = vld [vmem:[%s717] sm:$0xff]
    %v719 = vld [vmem:[%s717 + $0x8] sm:$0xff]
    %v721 = vsel %vm279, %v716, 0
    %723 = vmatprep.subr.mxu0 %v264
    %724 = vmatpush1.msra.mxu0 %v263
    %725 = vmatprep.subr.mxu0 %v266
    %726 = vmatpush1.msra.mxu0 %v265
    %727 = vmatprep.subr.mxu0 %v268
    %728 = vmatpush1.msra.mxu0 %v267
    %729 = vmatprep.subr.mxu0 %v270
    %730 = vmatpush1.msra.mxu0 %v269
    %731 = vmatprep.subr.mxu0 %v272
    %732 = vmatpush1.msra.mxu0 %v271
    %733 = vmatprep.subr.mxu0 %v274
    %734 = vmatpush1.msra.mxu0 %v273
    %735 = vmatprep.subr.mxu0 %v276
    %736 = vmatpush1.msra.mxu0 %v275
    %737 = vmatprep.subr.mxu0 %v278
    %738 = vmatpush1.msra.mxu0 %v277
    %739 = vmatprep.subr.mxu0 0.0
    %740 = vmatpush1.msra.mxu0 0.0
    %741 = vmatprep.subr.mxu0 0.0
    %742 = vmatpush1.msra.mxu0 0.0
    %743 = vmatprep.subr.mxu0 0.0
    %744 = vmatpush1.msra.mxu0 0.0
    %745 = vmatprep.subr.mxu0 0.0
    %746 = vmatpush1.msra.mxu0 0.0
    %747 = vmatprep.subr.mxu0 0.0
    %748 = vmatpush1.msra.mxu0 0.0
    %749 = vmatprep.subr.mxu0 0.0
    %750 = vmatpush1.msra.mxu0 0.0
    %751 = vmatprep.subr.mxu0 0.0
    %752 = vmatpush1.msra.mxu0 0.0
    %753 = vmatprep.subr.mxu0 0.0
    %754 = vmatpush1.msra.mxu0 0.0
    %755 = vmatprep.subr.mxu0 0.0
    %756 = vmatpush1.msra.mxu0 0.0
    %757 = vmatprep.subr.mxu0 0.0
    %758 = vmatpush1.msra.mxu0 0.0
    %759 = vmatprep.subr.mxu0 0.0
    %760 = vmatpush1.msra.mxu0 0.0
    %761 = vmatprep.subr.mxu0 0.0
    %762 = vmatpush1.msra.mxu0 0.0
    %763 = vmatprep.subr.mxu0 0.0
    %764 = vmatpush1.msra.mxu0 0.0
    %765 = vmatprep.subr.mxu0 0.0
    %766 = vmatpush1.msra.mxu0 0.0
    %767 = vmatprep.subr.mxu0 0.0
    %768 = vmatpush1.msra.mxu0 0.0
    %769 = vmatprep.subr.mxu0 0.0
    %770 = vmatpush1.msra.mxu0 0.0
    %771 = vmatprep.subr.mxu0 0.0
    %772 = vmatpush1.msra.mxu0 0.0
    %773 = vmatprep.subr.mxu0 0.0
    %774 = vmatpush1.msra.mxu0 0.0
    %775 = vmatprep.subr.mxu0 0.0
    %776 = vmatpush1.msra.mxu0 0.0
    %777 = vmatprep.subr.mxu0 0.0
    %778 = vmatpush1.msra.mxu0 0.0
    %779 = vmatprep.subr.mxu0 0.0
    %780 = vmatpush1.msra.mxu0 0.0
    %781 = vmatprep.subr.mxu0 0.0
    %782 = vmatpush1.msra.mxu0 0.0
    %783 = vmatprep.subr.mxu0 0.0
    %784 = vmatpush1.msra.mxu0 0.0
    %785 = vmatprep.subr.mxu0 0.0
    %786 = vmatpush1.msra.mxu0 0.0
    %787 = vmatprep.mubr.f32.mxu0 0.0
    %788 = vmatmul.mubr.f32.gmra.mrb[0].mxu0 %v721
    %v789 = vpop.f32.mrb[0].mxu0
    %v790 = vadd.f32 0.0, %v789
    %v791 = vpop.f32.mrb[0].mxu0
    %v792 = vadd.f32 0.0, %v791
    %793 = vdwg.mxu0
    %v794 = vadd.f32 %v718, %v790
    %v795 = vadd.f32 %v719, %v792
    %v796 = vxor.u32 %v794, 2147483648
    %v797 = vxor.u32 %v795, 2147483648
    %v798 = vmul.f32 %v796, 1.442695
    %v799 = vpow.pop %v798
    %v800 = vmul.f32 %v797, 1.442695
    %v801 = vpow.pop %v800
    %v802 = vadd.f32 %v799, 1.0
    %v803 = vadd.f32 %v801, 1.0
    %v804 = vrcp.pop %v802
    %v805 = vmul.f32 1.0, %v804
    %v806 = vrcp.pop %v803
    %v807 = vmul.f32 1.0, %v806
    %v808 = vmul.f32 %v807, 2.0
    %v809 = vsub.f32 %v808, 1.0
    %v810 = vmul.f32 %v805, %v710
    %812 = vrot.lane.b32.xlu0 %v809, 64
    %v813 = vpop.permute.xlu0 %812
    %v815 = vmul.f32 %v805, %v813
    %817 = vrot.lane.b32.xlu0 %v815, 64
    %v818 = vpop.permute.xlu0 %817
    %v820 = vadd.f32 %v810, %v818
    %v821 = vtanh.pop %v820
    %823 = vrot.lane.b32.xlu0 %v821, 64
    %v824 = vpop.permute.xlu0 %823
    %v826 = vmul.f32 %v807, %v824
    %s827 = scalar_lea.vmem [#allocation2], 80
    %v828 = vld [vmem:[%s827] sm:$0xff]
    %v829 = vld [vmem:[%s827 + $0x8] sm:$0xff]
    %v831 = vsel %vm279, %v826, 0
    %833 = vmatprep.subr.mxu0 %v264
    %834 = vmatpush1.msra.mxu0 %v263
    %835 = vmatprep.subr.mxu0 %v266
    %836 = vmatpush1.msra.mxu0 %v265
    %837 = vmatprep.subr.mxu0 %v268
    %838 = vmatpush1.msra.mxu0 %v267
    %839 = vmatprep.subr.mxu0 %v270
    %840 = vmatpush1.msra.mxu0 %v269
    %841 = vmatprep.subr.mxu0 %v272
    %842 = vmatpush1.msra.mxu0 %v271
    %843 = vmatprep.subr.mxu0 %v274
    %844 = vmatpush1.msra.mxu0 %v273
    %845 = vmatprep.subr.mxu0 %v276
    %846 = vmatpush1.msra.mxu0 %v275
    %847 = vmatprep.subr.mxu0 %v278
    %848 = vmatpush1.msra.mxu0 %v277
    %849 = vmatprep.subr.mxu0 0.0
    %850 = vmatpush1.msra.mxu0 0.0
    %851 = vmatprep.subr.mxu0 0.0
    %852 = vmatpush1.msra.mxu0 0.0
    %853 = vmatprep.subr.mxu0 0.0
    %854 = vmatpush1.msra.mxu0 0.0
    %855 = vmatprep.subr.mxu0 0.0
    %856 = vmatpush1.msra.mxu0 0.0
    %857 = vmatprep.subr.mxu0 0.0
    %858 = vmatpush1.msra.mxu0 0.0
    %859 = vmatprep.subr.mxu0 0.0
    %860 = vmatpush1.msra.mxu0 0.0
    %861 = vmatprep.subr.mxu0 0.0
    %862 = vmatpush1.msra.mxu0 0.0
    %863 = vmatprep.subr.mxu0 0.0
    %864 = vmatpush1.msra.mxu0 0.0
    %865 = vmatprep.subr.mxu0 0.0
    %866 = vmatpush1.msra.mxu0 0.0
    %867 = vmatprep.subr.mxu0 0.0
    %868 = vmatpush1.msra.mxu0 0.0
    %869 = vmatprep.subr.mxu0 0.0
    %870 = vmatpush1.msra.mxu0 0.0
    %871 = vmatprep.subr.mxu0 0.0
    %872 = vmatpush1.msra.mxu0 0.0
    %873 = vmatprep.subr.mxu0 0.0
    %874 = vmatpush1.msra.mxu0 0.0
    %875 = vmatprep.subr.mxu0 0.0
    %876 = vmatpush1.msra.mxu0 0.0
    %877 = vmatprep.subr.mxu0 0.0
    %878 = vmatpush1.msra.mxu0 0.0
    %879 = vmatprep.subr.mxu0 0.0
    %880 = vmatpush1.msra.mxu0 0.0
    %881 = vmatprep.subr.mxu0 0.0
    %882 = vmatpush1.msra.mxu0 0.0
    %883 = vmatprep.subr.mxu0 0.0
    %884 = vmatpush1.msra.mxu0 0.0
    %885 = vmatprep.subr.mxu0 0.0
    %886 = vmatpush1.msra.mxu0 0.0
    %887 = vmatprep.subr.mxu0 0.0
    %888 = vmatpush1.msra.mxu0 0.0
    %889 = vmatprep.subr.mxu0 0.0
    %890 = vmatpush1.msra.mxu0 0.0
    %891 = vmatprep.subr.mxu0 0.0
    %892 = vmatpush1.msra.mxu0 0.0
    %893 = vmatprep.subr.mxu0 0.0
    %894 = vmatpush1.msra.mxu0 0.0
    %895 = vmatprep.subr.mxu0 0.0
    %896 = vmatpush1.msra.mxu0 0.0
    %897 = vmatprep.mubr.f32.mxu0 0.0
    %898 = vmatmul.mubr.f32.gmra.mrb[0].mxu0 %v831
    %v899 = vpop.f32.mrb[0].mxu0
    %v900 = vadd.f32 0.0, %v899
    %v901 = vpop.f32.mrb[0].mxu0
    %v902 = vadd.f32 0.0, %v901
    %903 = vdwg.mxu0
    %v904 = vadd.f32 %v828, %v900
    %v905 = vadd.f32 %v829, %v902
    %v906 = vxor.u32 %v904, 2147483648
    %v907 = vxor.u32 %v905, 2147483648
    %v908 = vmul.f32 %v906, 1.442695
    %v909 = vpow.pop %v908
    %v910 = vmul.f32 %v907, 1.442695
    %v911 = vpow.pop %v910
    %v912 = vadd.f32 %v909, 1.0
    %v913 = vadd.f32 %v911, 1.0
    %v914 = vrcp.pop %v912
    %v915 = vmul.f32 1.0, %v914
    %v916 = vrcp.pop %v913
    %v917 = vmul.f32 1.0, %v916
    %v918 = vmul.f32 %v917, 2.0
    %v919 = vsub.f32 %v918, 1.0
    %v920 = vmul.f32 %v915, %v820
    %922 = vrot.lane.b32.xlu0 %v919, 64
    %v923 = vpop.permute.xlu0 %922
    %v925 = vmul.f32 %v915, %v923
    %927 = vrot.lane.b32.xlu0 %v925, 64
    %v928 = vpop.permute.xlu0 %927
    %v930 = vadd.f32 %v920, %v928
    %v931 = vtanh.pop %v930
    %933 = vrot.lane.b32.xlu0 %v931, 64
    %v934 = vpop.permute.xlu0 %933
    %v936 = vmul.f32 %v917, %v934
    %s937 = scalar_lea.vmem [#allocation2], 96
    %v938 = vld [vmem:[%s937] sm:$0xff]
    %v939 = vld [vmem:[%s937 + $0x8] sm:$0xff]
    %v941 = vsel %vm279, %v936, 0
    %943 = vmatprep.subr.mxu0 %v264
    %944 = vmatpush1.msra.mxu0 %v263
    %945 = vmatprep.subr.mxu0 %v266
    %946 = vmatpush1.msra.mxu0 %v265
    %947 = vmatprep.subr.mxu0 %v268
    %948 = vmatpush1.msra.mxu0 %v267
    %949 = vmatprep.subr.mxu0 %v270
    %950 = vmatpush1.msra.mxu0 %v269
    %951 = vmatprep.subr.mxu0 %v272
    %952 = vmatpush1.msra.mxu0 %v271
    %953 = vmatprep.subr.mxu0 %v274
    %954 = vmatpush1.msra.mxu0 %v273
    %955 = vmatprep.subr.mxu0 %v276
    %956 = vmatpush1.msra.mxu0 %v275
    %957 = vmatprep.subr.mxu0 %v278
    %958 = vmatpush1.msra.mxu0 %v277
    %959 = vmatprep.subr.mxu0 0.0
    %960 = vmatpush1.msra.mxu0 0.0
    %961 = vmatprep.subr.mxu0 0.0
    %962 = vmatpush1.msra.mxu0 0.0
    %963 = vmatprep.subr.mxu0 0.0
    %964 = vmatpush1.msra.mxu0 0.0
    %965 = vmatprep.subr.mxu0 0.0
    %966 = vmatpush1.msra.mxu0 0.0
    %967 = vmatprep.subr.mxu0 0.0
    %968 = vmatpush1.msra.mxu0 0.0
    %969 = vmatprep.subr.mxu0 0.0
    %970 = vmatpush1.msra.mxu0 0.0
    %971 = vmatprep.subr.mxu0 0.0
    %972 = vmatpush1.msra.mxu0 0.0
    %973 = vmatprep.subr.mxu0 0.0
    %974 = vmatpush1.msra.mxu0 0.0
    %975 = vmatprep.subr.mxu0 0.0
    %976 = vmatpush1.msra.mxu0 0.0
    %977 = vmatprep.subr.mxu0 0.0
    %978 = vmatpush1.msra.mxu0 0.0
    %979 = vmatprep.subr.mxu0 0.0
    %980 = vmatpush1.msra.mxu0 0.0
    %981 = vmatprep.subr.mxu0 0.0
    %982 = vmatpush1.msra.mxu0 0.0
    %983 = vmatprep.subr.mxu0 0.0
    %984 = vmatpush1.msra.mxu0 0.0
    %985 = vmatprep.subr.mxu0 0.0
    %986 = vmatpush1.msra.mxu0 0.0
    %987 = vmatprep.subr.mxu0 0.0
    %988 = vmatpush1.msra.mxu0 0.0
    %989 = vmatprep.subr.mxu0 0.0
    %990 = vmatpush1.msra.mxu0 0.0
    %991 = vmatprep.subr.mxu0 0.0
    %992 = vmatpush1.msra.mxu0 0.0
    %993 = vmatprep.subr.mxu0 0.0
    %994 = vmatpush1.msra.mxu0 0.0
    %995 = vmatprep.subr.mxu0 0.0
    %996 = vmatpush1.msra.mxu0 0.0
    %997 = vmatprep.subr.mxu0 0.0
    %998 = vmatpush1.msra.mxu0 0.0
    %999 = vmatprep.subr.mxu0 0.0
    %1000 = vmatpush1.msra.mxu0 0.0
    %1001 = vmatprep.subr.mxu0 0.0
    %1002 = vmatpush1.msra.mxu0 0.0
    %1003 = vmatprep.subr.mxu0 0.0
    %1004 = vmatpush1.msra.mxu0 0.0
    %1005 = vmatprep.subr.mxu0 0.0
    %1006 = vmatpush1.msra.mxu0 0.0
    %1007 = vmatprep.mubr.f32.mxu0 0.0
    %1008 = vmatmul.mubr.f32.gmra.mrb[0].mxu0 %v941
    %v1009 = vpop.f32.mrb[0].mxu0
    %v1010 = vadd.f32 0.0, %v1009
    %v1011 = vpop.f32.mrb[0].mxu0
    %v1012 = vadd.f32 0.0, %v1011
    %1013 = vdwg.mxu0
    %v1014 = vadd.f32 %v938, %v1010
    %v1015 = vadd.f32 %v939, %v1012
    %v1016 = vxor.u32 %v1014, 2147483648
    %v1017 = vxor.u32 %v1015, 2147483648
    %v1018 = vmul.f32 %v1016, 1.442695
    %v1019 = vpow.pop %v1018
    %v1020 = vmul.f32 %v1017, 1.442695
    %v1021 = vpow.pop %v1020
    %v1022 = vadd.f32 %v1019, 1.0
    %v1023 = vadd.f32 %v1021, 1.0
    %v1024 = vrcp.pop %v1022
    %v1025 = vmul.f32 1.0, %v1024
    %v1026 = vrcp.pop %v1023
    %v1027 = vmul.f32 1.0, %v1026
    %v1028 = vmul.f32 %v1027, 2.0
    %v1029 = vsub.f32 %v1028, 1.0
    %v1030 = vmul.f32 %v1025, %v930
    %1032 = vrot.lane.b32.xlu0 %v1029, 64
    %v1033 = vpop.permute.xlu0 %1032
    %v1035 = vmul.f32 %v1025, %v1033
    %1037 = vrot.lane.b32.xlu0 %v1035, 64
    %v1038 = vpop.permute.xlu0 %1037
    %v1040 = vadd.f32 %v1030, %v1038
    %v1041 = vtanh.pop %v1040
    %1043 = vrot.lane.b32.xlu0 %v1041, 64
    %v1044 = vpop.permute.xlu0 %1043
    %v1046 = vmul.f32 %v1027, %v1044
    %s1047 = scalar_lea.vmem [#allocation2], 112
    %v1048 = vld [vmem:[%s1047] sm:$0xff]
    %v1049 = vld [vmem:[%s1047 + $0x8] sm:$0xff]
    %v1051 = vsel %vm279, %v1046, 0
    %1053 = vmatprep.subr.mxu0 %v264
    %1054 = vmatpush1.msra.mxu0 %v263
    %1055 = vmatprep.subr.mxu0 %v266
    %1056 = vmatpush1.msra.mxu0 %v265
    %1057 = vmatprep.subr.mxu0 %v268
    %1058 = vmatpush1.msra.mxu0 %v267
    %1059 = vmatprep.subr.mxu0 %v270
    %1060 = vmatpush1.msra.mxu0 %v269
    %1061 = vmatprep.subr.mxu0 %v272
    %1062 = vmatpush1.msra.mxu0 %v271
    %1063 = vmatprep.subr.mxu0 %v274
    %1064 = vmatpush1.msra.mxu0 %v273
    %1065 = vmatprep.subr.mxu0 %v276
    %1066 = vmatpush1.msra.mxu0 %v275
    %1067 = vmatprep.subr.mxu0 %v278
    %1068 = vmatpush1.msra.mxu0 %v277
    %1069 = vmatprep.subr.mxu0 0.0
    %1070 = vmatpush1.msra.mxu0 0.0
    %1071 = vmatprep.subr.mxu0 0.0
    %1072 = vmatpush1.msra.mxu0 0.0
    %1073 = vmatprep.subr.mxu0 0.0
    %1074 = vmatpush1.msra.mxu0 0.0
    %1075 = vmatprep.subr.mxu0 0.0
    %1076 = vmatpush1.msra.mxu0 0.0
    %1077 = vmatprep.subr.mxu0 0.0
    %1078 = vmatpush1.msra.mxu0 0.0
    %1079 = vmatprep.subr.mxu0 0.0
    %1080 = vmatpush1.msra.mxu0 0.0
    %1081 = vmatprep.subr.mxu0 0.0
    %1082 = vmatpush1.msra.mxu0 0.0
    %1083 = vmatprep.subr.mxu0 0.0
    %1084 = vmatpush1.msra.mxu0 0.0
    %1085 = vmatprep.subr.mxu0 0.0
    %1086 = vmatpush1.msra.mxu0 0.0
    %1087 = vmatprep.subr.mxu0 0.0
    %1088 = vmatpush1.msra.mxu0 0.0
    %1089 = vmatprep.subr.mxu0 0.0
    %1090 = vmatpush1.msra.mxu0 0.0
    %1091 = vmatprep.subr.mxu0 0.0
    %1092 = vmatpush1.msra.mxu0 0.0
    %1093 = vmatprep.subr.mxu0 0.0
    %1094 = vmatpush1.msra.mxu0 0.0
    %1095 = vmatprep.subr.mxu0 0.0
    %1096 = vmatpush1.msra.mxu0 0.0
    %1097 = vmatprep.subr.mxu0 0.0
    %1098 = vmatpush1.msra.mxu0 0.0
    %1099 = vmatprep.subr.mxu0 0.0
    %1100 = vmatpush1.msra.mxu0 0.0
    %1101 = vmatprep.subr.mxu0 0.0
    %1102 = vmatpush1.msra.mxu0 0.0
    %1103 = vmatprep.subr.mxu0 0.0
    %1104 = vmatpush1.msra.mxu0 0.0
    %1105 = vmatprep.subr.mxu0 0.0
    %1106 = vmatpush1.msra.mxu0 0.0
    %1107 = vmatprep.subr.mxu0 0.0
    %1108 = vmatpush1.msra.mxu0 0.0
    %1109 = vmatprep.subr.mxu0 0.0
    %1110 = vmatpush1.msra.mxu0 0.0
    %1111 = vmatprep.subr.mxu0 0.0
    %1112 = vmatpush1.msra.mxu0 0.0
    %1113 = vmatprep.subr.mxu0 0.0
    %1114 = vmatpush1.msra.mxu0 0.0
    %1115 = vmatprep.subr.mxu0 0.0
    %1116 = vmatpush1.msra.mxu0 0.0
    %1117 = vmatprep.mubr.f32.mxu0 0.0
    %1118 = vmatmul.mubr.f32.gmra.mrb[0].mxu0 %v1051
    %v1119 = vpop.f32.mrb[0].mxu0
    %v1120 = vadd.f32 0.0, %v1119
    %v1121 = vpop.f32.mrb[0].mxu0
    %v1122 = vadd.f32 0.0, %v1121
    %1123 = vdwg.mxu0
    %v1124 = vadd.f32 %v1048, %v1120
    %v1125 = vadd.f32 %v1049, %v1122
    %v1126 = vxor.u32 %v1124, 2147483648
    %v1127 = vxor.u32 %v1125, 2147483648
    %v1128 = vmul.f32 %v1126, 1.442695
    %v1129 = vpow.pop %v1128
    %v1130 = vmul.f32 %v1127, 1.442695
    %v1131 = vpow.pop %v1130
    %v1132 = vadd.f32 %v1129, 1.0
    %v1133 = vadd.f32 %v1131, 1.0
    %v1134 = vrcp.pop %v1132
    %v1135 = vmul.f32 1.0, %v1134
    %v1136 = vrcp.pop %v1133
    %v1137 = vmul.f32 1.0, %v1136
    %v1138 = vmul.f32 %v1137, 2.0
    %v1139 = vsub.f32 %v1138, 1.0
    %v1140 = vmul.f32 %v1135, %v1040
    %1142 = vrot.lane.b32.xlu0 %v1139, 64
    %v1143 = vpop.permute.xlu0 %1142
    %v1145 = vmul.f32 %v1135, %v1143
    %1147 = vrot.lane.b32.xlu0 %v1145, 64
    %v1148 = vpop.permute.xlu0 %1147
    %v1150 = vadd.f32 %v1140, %v1148
    %v1151 = vtanh.pop %v1150
    %1153 = vrot.lane.b32.xlu0 %v1151, 64
    %v1154 = vpop.permute.xlu0 %1153
    %v1156 = vmul.f32 %v1137, %v1154
    %v1157 = vld [vmem:[#allocation9] sm:$0xff]
    %v1158 = vld [vmem:[#allocation9 + $0x8] sm:$0xff]
    %v1159 = vld [vmem:[#allocation9 + $0x10] sm:$0xff]
    %v1160 = vld [vmem:[#allocation9 + $0x18] sm:$0xff]
    %v1161 = vld [vmem:[#allocation9 + $0x20] sm:$0xff]
    %v1162 = vld [vmem:[#allocation9 + $0x28] sm:$0xff]
    %v1163 = vld [vmem:[#allocation9 + $0x30] sm:$0xff]
    %v1164 = vld [vmem:[#allocation9 + $0x38] sm:$0xff]
    %v1165 = vld [vmem:[%s5] sm:$0x1]
    %v1167 = vlaneseq
    %v1168 = vshrl.u32 %v1167, 7
    %v1169 = vsub.s32 0, %v1168
    %v1170 = vrot.slane %v1165, %v1169
    %v1173 = vsel %vm279, %v1156, 0
    %1175 = vmatprep.subr.mxu0 0.0
    %1176 = vmatpush1.msra.mxu0 %v1157
    %1177 = vmatprep.subr.mxu0 0.0
    %1178 = vmatpush1.msra.mxu0 %v1158
    %1179 = vmatprep.subr.mxu0 0.0
    %1180 = vmatpush1.msra.mxu0 %v1159
    %1181 = vmatprep.subr.mxu0 0.0
    %1182 = vmatpush1.msra.mxu0 %v1160
    %1183 = vmatprep.subr.mxu0 0.0
    %1184 = vmatpush1.msra.mxu0 %v1161
    %1185 = vmatprep.subr.mxu0 0.0
    %1186 = vmatpush1.msra.mxu0 %v1162
    %1187 = vmatprep.subr.mxu0 0.0
    %1188 = vmatpush1.msra.mxu0 %v1163
    %1189 = vmatprep.subr.mxu0 0.0
    %1190 = vmatpush1.msra.mxu0 %v1164
    %1191 = vmatprep.subr.mxu0 0.0
    %1192 = vmatpush1.msra.mxu0 0.0
    %1193 = vmatprep.subr.mxu0 0.0
    %1194 = vmatpush1.msra.mxu0 0.0
    %1195 = vmatprep.subr.mxu0 0.0
    %1196 = vmatpush1.msra.mxu0 0.0
    %1197 = vmatprep.subr.mxu0 0.0
    %1198 = vmatpush1.msra.mxu0 0.0
    %1199 = vmatprep.subr.mxu0 0.0
    %1200 = vmatpush1.msra.mxu0 0.0
    %1201 = vmatprep.subr.mxu0 0.0
    %1202 = vmatpush1.msra.mxu0 0.0
    %1203 = vmatprep.subr.mxu0 0.0
    %1204 = vmatpush1.msra.mxu0 0.0
    %1205 = vmatprep.subr.mxu0 0.0
    %1206 = vmatpush1.msra.mxu0 0.0
    %1207 = vmatprep.subr.mxu0 0.0
    %1208 = vmatpush1.msra.mxu0 0.0
    %1209 = vmatprep.subr.mxu0 0.0
    %1210 = vmatpush1.msra.mxu0 0.0
    %1211 = vmatprep.subr.mxu0 0.0
    %1212 = vmatpush1.msra.mxu0 0.0
    %1213 = vmatprep.subr.mxu0 0.0
    %1214 = vmatpush1.msra.mxu0 0.0
    %1215 = vmatprep.subr.mxu0 0.0
    %1216 = vmatpush1.msra.mxu0 0.0
    %1217 = vmatprep.subr.mxu0 0.0
    %1218 = vmatpush1.msra.mxu0 0.0
    %1219 = vmatprep.subr.mxu0 0.0
    %1220 = vmatpush1.msra.mxu0 0.0
    %1221 = vmatprep.subr.mxu0 0.0
    %1222 = vmatpush1.msra.mxu0 0.0
    %1223 = vmatprep.subr.mxu0 0.0
    %1224 = vmatpush1.msra.mxu0 0.0
    %1225 = vmatprep.subr.mxu0 0.0
    %1226 = vmatpush1.msra.mxu0 0.0
    %1227 = vmatprep.subr.mxu0 0.0
    %1228 = vmatpush1.msra.mxu0 0.0
    %1229 = vmatprep.subr.mxu0 0.0
    %1230 = vmatpush1.msra.mxu0 0.0
    %1231 = vmatprep.subr.mxu0 0.0
    %1232 = vmatpush1.msra.mxu0 0.0
    %1233 = vmatprep.subr.mxu0 0.0
    %1234 = vmatpush1.msra.mxu0 0.0
    %1235 = vmatprep.subr.mxu0 0.0
    %1236 = vmatpush1.msra.mxu0 0.0
    %1237 = vmatprep.subr.mxu0 0.0
    %1238 = vmatpush1.msra.mxu0 0.0
    %1239 = vmatprep.mubr.f32.mxu0 0.0
    %1240 = vmatmul.mubr.f32.gmra.mrb[0].mxu0 %v1173
    %v1241 = vpop.f32.mrb[0].mxu0
    %v1242 = vadd.f32 %v1170, %v1241
    %v1243 = vpop.f32.mrb[0].mxu0
    %1244 = vdwg.mxu0
    %v1245 = vxor.u32 %v1242, 2147483648
    %v1246 = vmul.f32 %v1245, 1.442695
    %v1247 = vpow.pop %v1246
    %v1248 = vadd.f32 %v1247, 1.0
    %v1249 = vrcp.pop %v1248
    %v1250 = vmul.f32 1.0, %v1249
    %1251 = vst [vmem:[#allocation11] sm:$0xff] %v1250
    // Predicated region
    $region42: #{tpu_custom_call.1} parent=1 // pred_check
      _
    $region43: #{tpu_custom_call.1} parent=1 // pred_check_branch
      %1253 = sbr.rel (0) target = $region45
    $region44: #{tpu_custom_call.1} parent=1 // pred_region
      %s1255 = ssub.s32 128, 128
      %1256 = vsyncadd [#allocation5], %s1255
      %s1258 = sshll.u32 [#allocation11], 4
      %s1259 = int_to_ptr.vmem [resolvable:$true] %s1258
      %1261 = dma.vmem_to_hbm [thread:$0]  %s1259, 128, %s6, [#allocation5]
    $region45: #{tpu_custom_call.1} parent=1 // pred_fallthru
      _
    // Predicated region
    $region46: #{tpu_custom_call.1} parent=1 // pred_check
      _
    $region47: #{tpu_custom_call.1} parent=1 // pred_check_branch
      %1263 = sbr.rel (0) target = $region49
    $region48: #{tpu_custom_call.1} parent=1 // pred_region
      %1264 = dma.done [#allocation5], 128
    $region49: #{tpu_custom_call.1} parent=1 // pred_fallthru
      _
    %1265 = vsyncpa [#allocation4], 1
    %1266 = vsyncpa [#allocation7], 1
    %1267 = vsyncpa [#allocation10], 1
    %1268 = vsyncpa [#allocation5], 1

</llo_original>
